<compile_context>
chip_gen: v7x
topology: tpu7x:2x2x1
jax: 0.10.0
libtpu: 0.0.40
codegen_flags: <defaults>
</compile_context>

<pallas_src>
import functools

import jax
import jax.numpy as jnp
from jax.experimental import pallas as pl
from jax.experimental.pallas import tpu as pltpu

# Model hyper-parameters (small, consistent with the module's __init__).
HIDDEN = 32
NUM_HEADS = 4
ATTN_WINDOW = 2          # seq_len must be a multiple of 2 * ATTN_WINDOW
FF_DIM = 64
SEQ = 8
BATCH = 2
EPS = 1e-5               # PyTorch nn.LayerNorm default eps


def _layernorm(x, gamma, beta):
    # PyTorch LayerNorm: biased variance over the last dim.
    mean = jnp.mean(x, axis=-1, keepdims=True)
    var = jnp.mean((x - mean) ** 2, axis=-1, keepdims=True)
    return (x - mean) * jax.lax.rsqrt(var + EPS) * gamma + beta


def transformer_layer_kernel(src_ref,
                             g1_ref, bt1_ref, g2_ref, bt2_ref,
                             w1_ref, b1_ref, w2_ref, b2_ref,
                             out_ref, attn_scratch, *,
                             batch, seq, num_heads, attention_window):
    x = src_ref[...].astype(jnp.float32)            # (B*S, H)
    _, Hd = x.shape
    dh = Hd // num_heads
    S = seq

    # In-kernel additive band mask: 0 inside the sliding window, -1e9 outside.
    row = jax.lax.broadcasted_iota(jnp.int32, (S, S), 0)
    col = jax.lax.broadcasted_iota(jnp.int32, (S, S), 1)
    band = jnp.where(jnp.abs(row - col) <= attention_window,
                     jnp.float32(0.0), jnp.float32(-1e9))

    # ---- sliding-window multi-head self-attention (q = k = v = x) ----
    # Static unroll over (batch, head); per-head results land directly in a
    # resident VMEM scratch slab (no concatenate / relayout).
    # NOTE: like the reference helpers, no 1/sqrt(dh) scaling is applied.
    for b in range(batch):
        xb = x[b * S:(b + 1) * S, :]                # (S, H)
        for h in range(num_heads):
            qh = xb[:, h * dh:(h + 1) * dh]         # (S, dh)
            s = jnp.dot(qh, qh.T, preferred_element_type=jnp.float32) + band
            s = s - jnp.max(s, axis=-1, keepdims=True)
            p = jnp.exp(s)
            p = p * pl.reciprocal(jnp.sum(p, axis=-1, keepdims=True), approx=True)
            attn_scratch[b * S:(b + 1) * S, h * dh:(h + 1) * dh] = jnp.dot(
                p, qh, preferred_element_type=jnp.float32)

    attn = attn_scratch[...]                        # (B*S, H)

    # TODO(synk): dropout is treated as identity (inference / eval semantics).
    y1 = _layernorm(x + attn, g1_ref[...], bt1_ref[...])

    # ---- feed-forward: Linear -> ReLU -> Linear (batch folded into M) ----
    h1 = jnp.maximum(
        jnp.dot(y1, w1_ref[...], preferred_element_type=jnp.float32) + b1_ref[...],
        0.0)
    ff = jnp.dot(h1, w2_ref[...], preferred_element_type=jnp.float32) + b2_ref[...]

    y2 = _layernorm(y1 + ff, g2_ref[...], bt2_ref[...])
    out_ref[...] = y2.astype(out_ref.dtype)


def make_params(key):
    ks = jax.random.split(key, 4)
    g1 = jnp.ones((1, HIDDEN), jnp.float32)       # norm1 weight
    bt1 = jnp.zeros((1, HIDDEN), jnp.float32)     # norm1 bias
    g2 = jnp.ones((1, HIDDEN), jnp.float32)       # norm2 weight
    bt2 = jnp.zeros((1, HIDDEN), jnp.float32)     # norm2 bias
    w1 = jax.random.normal(ks[0], (HIDDEN, FF_DIM), jnp.float32) * 0.05
    b1 = jax.random.normal(ks[1], (1, FF_DIM), jnp.float32) * 0.01
    w2 = jax.random.normal(ks[2], (FF_DIM, HIDDEN), jnp.float32) * 0.05
    b2 = jax.random.normal(ks[3], (1, HIDDEN), jnp.float32) * 0.01
    return (g1, bt1, g2, bt2, w1, b1, w2, b2)


def transformer_layer(src, params, *, num_heads=NUM_HEADS,
                      attention_window=ATTN_WINDOW):
    B, S, H = src.shape
    if S % (attention_window * 2) != 0:
        raise ValueError(
            'Sequence length must be a multiple of attention window size')

    g1, bt1, g2, bt2, w1, b1, w2, b2 = params
    ff_dim = w1.shape[1]

    # Fold batch into the row dimension so the whole problem is one grid step.
    x2d = src.reshape(B * S, H)

    kernel = functools.partial(
        transformer_layer_kernel, batch=B, seq=S,
        num_heads=num_heads, attention_window=attention_window)

    def full(shape):
        # Full-array block (satisfies the (8,128) rule by matching array dims).
        return pl.BlockSpec(shape, lambda i, _s=shape: (0,) * len(_s))

    grid_spec = pltpu.PrefetchScalarGridSpec(
        num_scalar_prefetch=0,
        grid=(1,),                                   # single step: pure fused kernel
        in_specs=[
            full((B * S, H)),                        # src (flattened)
            full((1, H)), full((1, H)), full((1, H)), full((1, H)),
            full((H, ff_dim)), full((1, ff_dim)),
            full((ff_dim, H)), full((1, H)),
        ],
        out_specs=full((B * S, H)),
        scratch_shapes=[pltpu.VMEM((B * S, H), jnp.float32)],   # attention slab
    )

    out2d = pl.pallas_call(
        kernel,
        out_shape=jax.ShapeDtypeStruct((B * S, H), jnp.float32),
        grid_spec=grid_spec,
        compiler_params=pltpu.CompilerParams(
            dimension_semantics=("arbitrary",)),
    )(x2d, g1, bt1, g2, bt2, w1, b1, w2, b2)

    return out2d.reshape(B, S, H)


if __name__ == "__main__":
    key = jax.random.PRNGKey(0)
    k_src, k_par = jax.random.split(key)
    src = jax.random.normal(k_src, (BATCH, SEQ, HIDDEN), jnp.float32)
    params = make_params(k_par)

    out = transformer_layer(src, params)
    jax.block_until_ready(out)
    assert out.shape == (BATCH, SEQ, HIDDEN)
    assert bool(jnp.all(jnp.isfinite(out)))
    print("KERNEL_OK")
</pallas_src>

<mosaic_0001>
module attributes {stable_mosaic.version = 11 : i64} {
  func.func @transformer_layer_kernel(%arg0: i32, %arg1: memref<16x32xf32, #tpu.memory_space<vmem>>, %arg2: memref<1x32xf32, #tpu.memory_space<vmem>>, %arg3: memref<1x32xf32, #tpu.memory_space<vmem>>, %arg4: memref<1x32xf32, #tpu.memory_space<vmem>>, %arg5: memref<1x32xf32, #tpu.memory_space<vmem>>, %arg6: memref<32x64xf32, #tpu.memory_space<vmem>>, %arg7: memref<1x64xf32, #tpu.memory_space<vmem>>, %arg8: memref<64x32xf32, #tpu.memory_space<vmem>>, %arg9: memref<1x32xf32, #tpu.memory_space<vmem>>, %arg10: memref<16x32xf32, #tpu.memory_space<vmem>>, %arg11: memref<16x32xf32, #tpu.memory_space<vmem>>) attributes {dimension_semantics = [#tpu.dimension_semantics<arbitrary>], iteration_bounds = array<i64: 1>, scalar_prefetch = 0 : i64, scratch_operands = 1 : i64, tpu.core_type = #tpu.core_type<tc>, window_params = [{pipeline_mode = #tpu.pipeline_mode<synchronous>, transform_indices = @transform_0, window_bounds = array<i64: 16, 32>}, {pipeline_mode = #tpu.pipeline_mode<synchronous>, transform_indices = @transform_1, window_bounds = array<i64: 1, 32>}, {pipeline_mode = #tpu.pipeline_mode<synchronous>, transform_indices = @transform_2, window_bounds = array<i64: 1, 32>}, {pipeline_mode = #tpu.pipeline_mode<synchronous>, transform_indices = @transform_3, window_bounds = array<i64: 1, 32>}, {pipeline_mode = #tpu.pipeline_mode<synchronous>, transform_indices = @transform_4, window_bounds = array<i64: 1, 32>}, {pipeline_mode = #tpu.pipeline_mode<synchronous>, transform_indices = @transform_5, window_bounds = array<i64: 32, 64>}, {pipeline_mode = #tpu.pipeline_mode<synchronous>, transform_indices = @transform_6, window_bounds = array<i64: 1, 64>}, {pipeline_mode = #tpu.pipeline_mode<synchronous>, transform_indices = @transform_7, window_bounds = array<i64: 64, 32>}, {pipeline_mode = #tpu.pipeline_mode<synchronous>, transform_indices = @transform_8, window_bounds = array<i64: 1, 32>}, {pipeline_mode = #tpu.pipeline_mode<synchronous>, transform_indices = @transform_9, window_bounds = array<i64: 16, 32>}]} {
    %c0 = arith.constant 0 : index
    %c0_0 = arith.constant 0 : index
    %0 = vector.load %arg1[%c0, %c0_0] : memref<16x32xf32, #tpu.memory_space<vmem>>, vector<16x32xf32>
    %1 = tpu.iota {dimensions = array<i32: 0>} : vector<8x8xi32>
    %2 = tpu.iota {dimensions = array<i32: 1>} : vector<8x8xi32>
    %3 = arith.subi %1, %2 : vector<8x8xi32>
    %4 = math.absi %3 : vector<8x8xi32>
    %c2_i32 = arith.constant 2 : i32
    %5 = vector.broadcast %c2_i32 : i32 to vector<8x8xi32>
    %6 = arith.cmpi sle, %4, %5 : vector<8x8xi32>
    %cst = arith.constant 0.000000e+00 : f32
    %cst_1 = arith.constant -1.000000e+09 : f32
    %7 = vector.broadcast %cst : f32 to vector<8x8xf32>
    %8 = vector.broadcast %cst_1 : f32 to vector<8x8xf32>
    %9 = arith.select %6, %7, %8 : vector<8x8xi1>, vector<8x8xf32>
    %10 = vector.extract_strided_slice %0 {offsets = [0, 0], sizes = [8, 32], strides = [1, 1]} : vector<16x32xf32> to vector<8x32xf32>
    %11 = vector.extract_strided_slice %10 {offsets = [0, 0], sizes = [8, 8], strides = [1, 1]} : vector<8x32xf32> to vector<8x8xf32>
    %12 = tpu.transpose %11, [1, 0] : vector<8x8xf32> -> vector<8x8xf32>
    %cst_2 = arith.constant dense<0.000000e+00> : vector<8x8xf32>
    %13 = tpu.matmul %11, %12, %cst_2 {dimension_numbers = #tpu.dot_dimension_numbers<[1], [0], [0], [1], [0, 0, 1, 1], [], []>} : vector<8x8xf32>, vector<8x8xf32>, vector<8x8xf32> -> vector<8x8xf32>
    %14 = arith.addf %13, %9 : vector<8x8xf32>
    %cst_3 = arith.constant dense<0xFF800000> : vector<8xf32>
    %15 = vector.multi_reduction <maximumf>, %14, %cst_3 [1] : vector<8x8xf32> to vector<8xf32>
    %16 = vector.shape_cast %15 : vector<8xf32> to vector<8x1xf32>
    %17 = vector.broadcast %16 : vector<8x1xf32> to vector<8x8xf32>
    %18 = arith.subf %14, %17 : vector<8x8xf32>
    %19 = math.exp %18 : vector<8x8xf32>
    %cst_4 = arith.constant dense<0.000000e+00> : vector<8xf32>
    %20 = vector.multi_reduction <add>, %19, %cst_4 [1] : vector<8x8xf32> to vector<8xf32>
    %21 = vector.shape_cast %20 : vector<8xf32> to vector<8x1xf32>
    %22 = tpu.reciprocal %21 {approx = true} : vector<8x1xf32> -> vector<8x1xf32>
    %23 = vector.broadcast %22 : vector<8x1xf32> to vector<8x8xf32>
    %24 = arith.mulf %19, %23 : vector<8x8xf32>
    %cst_5 = arith.constant dense<0.000000e+00> : vector<8x8xf32>
    %25 = tpu.matmul %24, %11, %cst_5 {dimension_numbers = #tpu.dot_dimension_numbers<[1], [0], [0], [1], [0, 0, 1, 1], [], []>} : vector<8x8xf32>, vector<8x8xf32>, vector<8x8xf32> -> vector<8x8xf32>
    %c0_6 = arith.constant 0 : index
    %c0_7 = arith.constant 0 : index
    %26 = vector.load %arg11[%c0_6, %c0_7] : memref<16x32xf32, #tpu.memory_space<vmem>>, vector<8x8xf32>
    tpu.vector_store %arg11[%c0_6, %c0_7], %25 {strides = array<i32>} : memref<16x32xf32, #tpu.memory_space<vmem>>, vector<8x8xf32>,
    %27 = vector.extract_strided_slice %10 {offsets = [0, 8], sizes = [8, 8], strides = [1, 1]} : vector<8x32xf32> to vector<8x8xf32>
    %28 = tpu.transpose %27, [1, 0] : vector<8x8xf32> -> vector<8x8xf32>
    %cst_8 = arith.constant dense<0.000000e+00> : vector<8x8xf32>
    %29 = tpu.matmul %27, %28, %cst_8 {dimension_numbers = #tpu.dot_dimension_numbers<[1], [0], [0], [1], [0, 0, 1, 1], [], []>} : vector<8x8xf32>, vector<8x8xf32>, vector<8x8xf32> -> vector<8x8xf32>
    %30 = arith.addf %29, %9 : vector<8x8xf32>
    %cst_9 = arith.constant dense<0xFF800000> : vector<8xf32>
    %31 = vector.multi_reduction <maximumf>, %30, %cst_9 [1] : vector<8x8xf32> to vector<8xf32>
    %32 = vector.shape_cast %31 : vector<8xf32> to vector<8x1xf32>
    %33 = vector.broadcast %32 : vector<8x1xf32> to vector<8x8xf32>
    %34 = arith.subf %30, %33 : vector<8x8xf32>
    %35 = math.exp %34 : vector<8x8xf32>
    %cst_10 = arith.constant dense<0.000000e+00> : vector<8xf32>
    %36 = vector.multi_reduction <add>, %35, %cst_10 [1] : vector<8x8xf32> to vector<8xf32>
    %37 = vector.shape_cast %36 : vector<8xf32> to vector<8x1xf32>
    %38 = tpu.reciprocal %37 {approx = true} : vector<8x1xf32> -> vector<8x1xf32>
    %39 = vector.broadcast %38 : vector<8x1xf32> to vector<8x8xf32>
    %40 = arith.mulf %35, %39 : vector<8x8xf32>
    %cst_11 = arith.constant dense<0.000000e+00> : vector<8x8xf32>
    %41 = tpu.matmul %40, %27, %cst_11 {dimension_numbers = #tpu.dot_dimension_numbers<[1], [0], [0], [1], [0, 0, 1, 1], [], []>} : vector<8x8xf32>, vector<8x8xf32>, vector<8x8xf32> -> vector<8x8xf32>
    %c0_12 = arith.constant 0 : index
    %c8 = arith.constant 8 : index
    %42 = vector.load %arg11[%c0_12, %c8] : memref<16x32xf32, #tpu.memory_space<vmem>>, vector<8x8xf32>
    tpu.vector_store %arg11[%c0_12, %c8], %41 {strides = array<i32>} : memref<16x32xf32, #tpu.memory_space<vmem>>, vector<8x8xf32>,
    %43 = vector.extract_strided_slice %10 {offsets = [0, 16], sizes = [8, 8], strides = [1, 1]} : vector<8x32xf32> to vector<8x8xf32>
    %44 = tpu.transpose %43, [1, 0] : vector<8x8xf32> -> vector<8x8xf32>
    %cst_13 = arith.constant dense<0.000000e+00> : vector<8x8xf32>
    %45 = tpu.matmul %43, %44, %cst_13 {dimension_numbers = #tpu.dot_dimension_numbers<[1], [0], [0], [1], [0, 0, 1, 1], [], []>} : vector<8x8xf32>, vector<8x8xf32>, vector<8x8xf32> -> vector<8x8xf32>
    %46 = arith.addf %45, %9 : vector<8x8xf32>
    %cst_14 = arith.constant dense<0xFF800000> : vector<8xf32>
    %47 = vector.multi_reduction <maximumf>, %46, %cst_14 [1] : vector<8x8xf32> to vector<8xf32>
    %48 = vector.shape_cast %47 : vector<8xf32> to vector<8x1xf32>
    %49 = vector.broadcast %48 : vector<8x1xf32> to vector<8x8xf32>
    %50 = arith.subf %46, %49 : vector<8x8xf32>
    %51 = math.exp %50 : vector<8x8xf32>
    %cst_15 = arith.constant dense<0.000000e+00> : vector<8xf32>
    %52 = vector.multi_reduction <add>, %51, %cst_15 [1] : vector<8x8xf32> to vector<8xf32>
    %53 = vector.shape_cast %52 : vector<8xf32> to vector<8x1xf32>
    %54 = tpu.reciprocal %53 {approx = true} : vector<8x1xf32> -> vector<8x1xf32>
    %55 = vector.broadcast %54 : vector<8x1xf32> to vector<8x8xf32>
    %56 = arith.mulf %51, %55 : vector<8x8xf32>
    %cst_16 = arith.constant dense<0.000000e+00> : vector<8x8xf32>
    %57 = tpu.matmul %56, %43, %cst_16 {dimension_numbers = #tpu.dot_dimension_numbers<[1], [0], [0], [1], [0, 0, 1, 1], [], []>} : vector<8x8xf32>, vector<8x8xf32>, vector<8x8xf32> -> vector<8x8xf32>
    %c0_17 = arith.constant 0 : index
    %c16 = arith.constant 16 : index
    %58 = vector.load %arg11[%c0_17, %c16] : memref<16x32xf32, #tpu.memory_space<vmem>>, vector<8x8xf32>
    tpu.vector_store %arg11[%c0_17, %c16], %57 {strides = array<i32>} : memref<16x32xf32, #tpu.memory_space<vmem>>, vector<8x8xf32>,
    %59 = vector.extract_strided_slice %10 {offsets = [0, 24], sizes = [8, 8], strides = [1, 1]} : vector<8x32xf32> to vector<8x8xf32>
    %60 = tpu.transpose %59, [1, 0] : vector<8x8xf32> -> vector<8x8xf32>
    %cst_18 = arith.constant dense<0.000000e+00> : vector<8x8xf32>
    %61 = tpu.matmul %59, %60, %cst_18 {dimension_numbers = #tpu.dot_dimension_numbers<[1], [0], [0], [1], [0, 0, 1, 1], [], []>} : vector<8x8xf32>, vector<8x8xf32>, vector<8x8xf32> -> vector<8x8xf32>
    %62 = arith.addf %61, %9 : vector<8x8xf32>
    %cst_19 = arith.constant dense<0xFF800000> : vector<8xf32>
    %63 = vector.multi_reduction <maximumf>, %62, %cst_19 [1] : vector<8x8xf32> to vector<8xf32>
    %64 = vector.shape_cast %63 : vector<8xf32> to vector<8x1xf32>
    %65 = vector.broadcast %64 : vector<8x1xf32> to vector<8x8xf32>
    %66 = arith.subf %62, %65 : vector<8x8xf32>
    %67 = math.exp %66 : vector<8x8xf32>
    %cst_20 = arith.constant dense<0.000000e+00> : vector<8xf32>
    %68 = vector.multi_reduction <add>, %67, %cst_20 [1] : vector<8x8xf32> to vector<8xf32>
    %69 = vector.shape_cast %68 : vector<8xf32> to vector<8x1xf32>
    %70 = tpu.reciprocal %69 {approx = true} : vector<8x1xf32> -> vector<8x1xf32>
    %71 = vector.broadcast %70 : vector<8x1xf32> to vector<8x8xf32>
    %72 = arith.mulf %67, %71 : vector<8x8xf32>
    %cst_21 = arith.constant dense<0.000000e+00> : vector<8x8xf32>
    %73 = tpu.matmul %72, %59, %cst_21 {dimension_numbers = #tpu.dot_dimension_numbers<[1], [0], [0], [1], [0, 0, 1, 1], [], []>} : vector<8x8xf32>, vector<8x8xf32>, vector<8x8xf32> -> vector<8x8xf32>
    %c0_22 = arith.constant 0 : index
    %c24 = arith.constant 24 : index
    %74 = vector.load %arg11[%c0_22, %c24] : memref<16x32xf32, #tpu.memory_space<vmem>>, vector<8x8xf32>
    tpu.vector_store %arg11[%c0_22, %c24], %73 {strides = array<i32>} : memref<16x32xf32, #tpu.memory_space<vmem>>, vector<8x8xf32>,
    %75 = vector.extract_strided_slice %0 {offsets = [8, 0], sizes = [8, 32], strides = [1, 1]} : vector<16x32xf32> to vector<8x32xf32>
    %76 = vector.extract_strided_slice %75 {offsets = [0, 0], sizes = [8, 8], strides = [1, 1]} : vector<8x32xf32> to vector<8x8xf32>
    %77 = tpu.transpose %76, [1, 0] : vector<8x8xf32> -> vector<8x8xf32>
    %cst_23 = arith.constant dense<0.000000e+00> : vector<8x8xf32>
    %78 = tpu.matmul %76, %77, %cst_23 {dimension_numbers = #tpu.dot_dimension_numbers<[1], [0], [0], [1], [0, 0, 1, 1], [], []>} : vector<8x8xf32>, vector<8x8xf32>, vector<8x8xf32> -> vector<8x8xf32>
    %79 = arith.addf %78, %9 : vector<8x8xf32>
    %cst_24 = arith.constant dense<0xFF800000> : vector<8xf32>
    %80 = vector.multi_reduction <maximumf>, %79, %cst_24 [1] : vector<8x8xf32> to vector<8xf32>
    %81 = vector.shape_cast %80 : vector<8xf32> to vector<8x1xf32>
    %82 = vector.broadcast %81 : vector<8x1xf32> to vector<8x8xf32>
    %83 = arith.subf %79, %82 : vector<8x8xf32>
    %84 = math.exp %83 : vector<8x8xf32>
    %cst_25 = arith.constant dense<0.000000e+00> : vector<8xf32>
    %85 = vector.multi_reduction <add>, %84, %cst_25 [1] : vector<8x8xf32> to vector<8xf32>
    %86 = vector.shape_cast %85 : vector<8xf32> to vector<8x1xf32>
    %87 = tpu.reciprocal %86 {approx = true} : vector<8x1xf32> -> vector<8x1xf32>
    %88 = vector.broadcast %87 : vector<8x1xf32> to vector<8x8xf32>
    %89 = arith.mulf %84, %88 : vector<8x8xf32>
    %cst_26 = arith.constant dense<0.000000e+00> : vector<8x8xf32>
    %90 = tpu.matmul %89, %76, %cst_26 {dimension_numbers = #tpu.dot_dimension_numbers<[1], [0], [0], [1], [0, 0, 1, 1], [], []>} : vector<8x8xf32>, vector<8x8xf32>, vector<8x8xf32> -> vector<8x8xf32>
    %c8_27 = arith.constant 8 : index
    %c0_28 = arith.constant 0 : index
    %91 = vector.load %arg11[%c8_27, %c0_28] : memref<16x32xf32, #tpu.memory_space<vmem>>, vector<8x8xf32>
    tpu.vector_store %arg11[%c8_27, %c0_28], %90 {strides = array<i32>} : memref<16x32xf32, #tpu.memory_space<vmem>>, vector<8x8xf32>,
    %92 = vector.extract_strided_slice %75 {offsets = [0, 8], sizes = [8, 8], strides = [1, 1]} : vector<8x32xf32> to vector<8x8xf32>
    %93 = tpu.transpose %92, [1, 0] : vector<8x8xf32> -> vector<8x8xf32>
    %cst_29 = arith.constant dense<0.000000e+00> : vector<8x8xf32>
    %94 = tpu.matmul %92, %93, %cst_29 {dimension_numbers = #tpu.dot_dimension_numbers<[1], [0], [0], [1], [0, 0, 1, 1], [], []>} : vector<8x8xf32>, vector<8x8xf32>, vector<8x8xf32> -> vector<8x8xf32>
    %95 = arith.addf %94, %9 : vector<8x8xf32>
    %cst_30 = arith.constant dense<0xFF800000> : vector<8xf32>
    %96 = vector.multi_reduction <maximumf>, %95, %cst_30 [1] : vector<8x8xf32> to vector<8xf32>
    %97 = vector.shape_cast %96 : vector<8xf32> to vector<8x1xf32>
    %98 = vector.broadcast %97 : vector<8x1xf32> to vector<8x8xf32>
    %99 = arith.subf %95, %98 : vector<8x8xf32>
    %100 = math.exp %99 : vector<8x8xf32>
    %cst_31 = arith.constant dense<0.000000e+00> : vector<8xf32>
    %101 = vector.multi_reduction <add>, %100, %cst_31 [1] : vector<8x8xf32> to vector<8xf32>
    %102 = vector.shape_cast %101 : vector<8xf32> to vector<8x1xf32>
    %103 = tpu.reciprocal %102 {approx = true} : vector<8x1xf32> -> vector<8x1xf32>
    %104 = vector.broadcast %103 : vector<8x1xf32> to vector<8x8xf32>
    %105 = arith.mulf %100, %104 : vector<8x8xf32>
    %cst_32 = arith.constant dense<0.000000e+00> : vector<8x8xf32>
    %106 = tpu.matmul %105, %92, %cst_32 {dimension_numbers = #tpu.dot_dimension_numbers<[1], [0], [0], [1], [0, 0, 1, 1], [], []>} : vector<8x8xf32>, vector<8x8xf32>, vector<8x8xf32> -> vector<8x8xf32>
    %c8_33 = arith.constant 8 : index
    %c8_34 = arith.constant 8 : index
    %107 = vector.load %arg11[%c8_33, %c8_34] : memref<16x32xf32, #tpu.memory_space<vmem>>, vector<8x8xf32>
    tpu.vector_store %arg11[%c8_33, %c8_34], %106 {strides = array<i32>} : memref<16x32xf32, #tpu.memory_space<vmem>>, vector<8x8xf32>,
    %108 = vector.extract_strided_slice %75 {offsets = [0, 16], sizes = [8, 8], strides = [1, 1]} : vector<8x32xf32> to vector<8x8xf32>
    %109 = tpu.transpose %108, [1, 0] : vector<8x8xf32> -> vector<8x8xf32>
    %cst_35 = arith.constant dense<0.000000e+00> : vector<8x8xf32>
    %110 = tpu.matmul %108, %109, %cst_35 {dimension_numbers = #tpu.dot_dimension_numbers<[1], [0], [0], [1], [0, 0, 1, 1], [], []>} : vector<8x8xf32>, vector<8x8xf32>, vector<8x8xf32> -> vector<8x8xf32>
    %111 = arith.addf %110, %9 : vector<8x8xf32>
    %cst_36 = arith.constant dense<0xFF800000> : vector<8xf32>
    %112 = vector.multi_reduction <maximumf>, %111, %cst_36 [1] : vector<8x8xf32> to vector<8xf32>
    %113 = vector.shape_cast %112 : vector<8xf32> to vector<8x1xf32>
    %114 = vector.broadcast %113 : vector<8x1xf32> to vector<8x8xf32>
    %115 = arith.subf %111, %114 : vector<8x8xf32>
    %116 = math.exp %115 : vector<8x8xf32>
    %cst_37 = arith.constant dense<0.000000e+00> : vector<8xf32>
    %117 = vector.multi_reduction <add>, %116, %cst_37 [1] : vector<8x8xf32> to vector<8xf32>
    %118 = vector.shape_cast %117 : vector<8xf32> to vector<8x1xf32>
    %119 = tpu.reciprocal %118 {approx = true} : vector<8x1xf32> -> vector<8x1xf32>
    %120 = vector.broadcast %119 : vector<8x1xf32> to vector<8x8xf32>
    %121 = arith.mulf %116, %120 : vector<8x8xf32>
    %cst_38 = arith.constant dense<0.000000e+00> : vector<8x8xf32>
    %122 = tpu.matmul %121, %108, %cst_38 {dimension_numbers = #tpu.dot_dimension_numbers<[1], [0], [0], [1], [0, 0, 1, 1], [], []>} : vector<8x8xf32>, vector<8x8xf32>, vector<8x8xf32> -> vector<8x8xf32>
    %c8_39 = arith.constant 8 : index
    %c16_40 = arith.constant 16 : index
    %123 = vector.load %arg11[%c8_39, %c16_40] : memref<16x32xf32, #tpu.memory_space<vmem>>, vector<8x8xf32>
    tpu.vector_store %arg11[%c8_39, %c16_40], %122 {strides = array<i32>} : memref<16x32xf32, #tpu.memory_space<vmem>>, vector<8x8xf32>,
    %124 = vector.extract_strided_slice %75 {offsets = [0, 24], sizes = [8, 8], strides = [1, 1]} : vector<8x32xf32> to vector<8x8xf32>
    %125 = tpu.transpose %124, [1, 0] : vector<8x8xf32> -> vector<8x8xf32>
    %cst_41 = arith.constant dense<0.000000e+00> : vector<8x8xf32>
    %126 = tpu.matmul %124, %125, %cst_41 {dimension_numbers = #tpu.dot_dimension_numbers<[1], [0], [0], [1], [0, 0, 1, 1], [], []>} : vector<8x8xf32>, vector<8x8xf32>, vector<8x8xf32> -> vector<8x8xf32>
    %127 = arith.addf %126, %9 : vector<8x8xf32>
    %cst_42 = arith.constant dense<0xFF800000> : vector<8xf32>
    %128 = vector.multi_reduction <maximumf>, %127, %cst_42 [1] : vector<8x8xf32> to vector<8xf32>
    %129 = vector.shape_cast %128 : vector<8xf32> to vector<8x1xf32>
    %130 = vector.broadcast %129 : vector<8x1xf32> to vector<8x8xf32>
    %131 = arith.subf %127, %130 : vector<8x8xf32>
    %132 = math.exp %131 : vector<8x8xf32>
    %cst_43 = arith.constant dense<0.000000e+00> : vector<8xf32>
    %133 = vector.multi_reduction <add>, %132, %cst_43 [1] : vector<8x8xf32> to vector<8xf32>
    %134 = vector.shape_cast %133 : vector<8xf32> to vector<8x1xf32>
    %135 = tpu.reciprocal %134 {approx = true} : vector<8x1xf32> -> vector<8x1xf32>
    %136 = vector.broadcast %135 : vector<8x1xf32> to vector<8x8xf32>
    %137 = arith.mulf %132, %136 : vector<8x8xf32>
    %cst_44 = arith.constant dense<0.000000e+00> : vector<8x8xf32>
    %138 = tpu.matmul %137, %124, %cst_44 {dimension_numbers = #tpu.dot_dimension_numbers<[1], [0], [0], [1], [0, 0, 1, 1], [], []>} : vector<8x8xf32>, vector<8x8xf32>, vector<8x8xf32> -> vector<8x8xf32>
    %c8_45 = arith.constant 8 : index
    %c24_46 = arith.constant 24 : index
    %139 = vector.load %arg11[%c8_45, %c24_46] : memref<16x32xf32, #tpu.memory_space<vmem>>, vector<8x8xf32>
    tpu.vector_store %arg11[%c8_45, %c24_46], %138 {strides = array<i32>} : memref<16x32xf32, #tpu.memory_space<vmem>>, vector<8x8xf32>,
    %c0_47 = arith.constant 0 : index
    %c0_48 = arith.constant 0 : index
    %140 = vector.load %arg11[%c0_47, %c0_48] : memref<16x32xf32, #tpu.memory_space<vmem>>, vector<16x32xf32>
    %141 = arith.addf %0, %140 : vector<16x32xf32>
    %c0_49 = arith.constant 0 : index
    %c0_50 = arith.constant 0 : index
    %142 = vector.load %arg2[%c0_49, %c0_50] : memref<1x32xf32, #tpu.memory_space<vmem>>, vector<1x32xf32>
    %c0_51 = arith.constant 0 : index
    %c0_52 = arith.constant 0 : index
    %143 = vector.load %arg3[%c0_51, %c0_52] : memref<1x32xf32, #tpu.memory_space<vmem>>, vector<1x32xf32>
    %cst_53 = arith.constant dense<0.000000e+00> : vector<16xf32>
    %144 = vector.multi_reduction <add>, %141, %cst_53 [1] : vector<16x32xf32> to vector<16xf32>
    %145 = vector.shape_cast %144 : vector<16xf32> to vector<16x1xf32>
    %cst_54 = arith.constant 3.200000e+01 : f32
    %146 = vector.broadcast %cst_54 : f32 to vector<16x1xf32>
    %147 = arith.divf %145, %146 : vector<16x1xf32>
    %148 = vector.broadcast %147 : vector<16x1xf32> to vector<16x32xf32>
    %149 = arith.subf %141, %148 : vector<16x32xf32>
    %150 = arith.mulf %149, %149 : vector<16x32xf32>
    %cst_55 = arith.constant dense<0.000000e+00> : vector<16xf32>
    %151 = vector.multi_reduction <add>, %150, %cst_55 [1] : vector<16x32xf32> to vector<16xf32>
    %152 = vector.shape_cast %151 : vector<16xf32> to vector<16x1xf32>
    %cst_56 = arith.constant 3.200000e+01 : f32
    %153 = vector.broadcast %cst_56 : f32 to vector<16x1xf32>
    %154 = arith.divf %152, %153 : vector<16x1xf32>
    %155 = vector.broadcast %147 : vector<16x1xf32> to vector<16x32xf32>
    %156 = arith.subf %141, %155 : vector<16x32xf32>
    %cst_57 = arith.constant 9.99999974E-6 : f32
    %157 = vector.broadcast %cst_57 : f32 to vector<16x1xf32>
    %158 = arith.addf %154, %157 : vector<16x1xf32>
    %159 = math.rsqrt %158 : vector<16x1xf32>
    %160 = vector.broadcast %159 : vector<16x1xf32> to vector<16x32xf32>
    %161 = arith.mulf %156, %160 : vector<16x32xf32>
    %162 = vector.broadcast %142 : vector<1x32xf32> to vector<16x32xf32>
    %163 = arith.mulf %161, %162 : vector<16x32xf32>
    %164 = vector.broadcast %143 : vector<1x32xf32> to vector<16x32xf32>
    %165 = arith.addf %163, %164 : vector<16x32xf32>
    %c0_58 = arith.constant 0 : index
    %c0_59 = arith.constant 0 : index
    %166 = vector.load %arg6[%c0_58, %c0_59] : memref<32x64xf32, #tpu.memory_space<vmem>>, vector<32x64xf32>
    %cst_60 = arith.constant dense<0.000000e+00> : vector<16x64xf32>
    %167 = tpu.matmul %165, %166, %cst_60 {dimension_numbers = #tpu.dot_dimension_numbers<[1], [0], [0], [1], [0, 0, 1, 1], [], []>} : vector<16x32xf32>, vector<32x64xf32>, vector<16x64xf32> -> vector<16x64xf32>
    %c0_61 = arith.constant 0 : index
    %c0_62 = arith.constant 0 : index
    %168 = vector.load %arg7[%c0_61, %c0_62] : memref<1x64xf32, #tpu.memory_space<vmem>>, vector<1x64xf32>
    %169 = vector.broadcast %168 : vector<1x64xf32> to vector<16x64xf32>
    %170 = arith.addf %167, %169 : vector<16x64xf32>
    %cst_63 = arith.constant 0.000000e+00 : f32
    %171 = vector.broadcast %cst_63 : f32 to vector<16x64xf32>
    %172 = arith.maximumf %170, %171 : vector<16x64xf32>
    %c0_64 = arith.constant 0 : index
    %c0_65 = arith.constant 0 : index
    %173 = vector.load %arg8[%c0_64, %c0_65] : memref<64x32xf32, #tpu.memory_space<vmem>>, vector<64x32xf32>
    %cst_66 = arith.constant dense<0.000000e+00> : vector<16x32xf32>
    %174 = tpu.matmul %172, %173, %cst_66 {dimension_numbers = #tpu.dot_dimension_numbers<[1], [0], [0], [1], [0, 0, 1, 1], [], []>} : vector<16x64xf32>, vector<64x32xf32>, vector<16x32xf32> -> vector<16x32xf32>
    %c0_67 = arith.constant 0 : index
    %c0_68 = arith.constant 0 : index
    %175 = vector.load %arg9[%c0_67, %c0_68] : memref<1x32xf32, #tpu.memory_space<vmem>>, vector<1x32xf32>
    %176 = vector.broadcast %175 : vector<1x32xf32> to vector<16x32xf32>
    %177 = arith.addf %174, %176 : vector<16x32xf32>
    %178 = arith.addf %165, %177 : vector<16x32xf32>
    %c0_69 = arith.constant 0 : index
    %c0_70 = arith.constant 0 : index
    %179 = vector.load %arg4[%c0_69, %c0_70] : memref<1x32xf32, #tpu.memory_space<vmem>>, vector<1x32xf32>
    %c0_71 = arith.constant 0 : index
    %c0_72 = arith.constant 0 : index
    %180 = vector.load %arg5[%c0_71, %c0_72] : memref<1x32xf32, #tpu.memory_space<vmem>>, vector<1x32xf32>
    %cst_73 = arith.constant dense<0.000000e+00> : vector<16xf32>
    %181 = vector.multi_reduction <add>, %178, %cst_73 [1] : vector<16x32xf32> to vector<16xf32>
    %182 = vector.shape_cast %181 : vector<16xf32> to vector<16x1xf32>
    %cst_74 = arith.constant 3.200000e+01 : f32
    %183 = vector.broadcast %cst_74 : f32 to vector<16x1xf32>
    %184 = arith.divf %182, %183 : vector<16x1xf32>
    %185 = vector.broadcast %184 : vector<16x1xf32> to vector<16x32xf32>
    %186 = arith.subf %178, %185 : vector<16x32xf32>
    %187 = arith.mulf %186, %186 : vector<16x32xf32>
    %cst_75 = arith.constant dense<0.000000e+00> : vector<16xf32>
    %188 = vector.multi_reduction <add>, %187, %cst_75 [1] : vector<16x32xf32> to vector<16xf32>
    %189 = vector.shape_cast %188 : vector<16xf32> to vector<16x1xf32>
    %cst_76 = arith.constant 3.200000e+01 : f32
    %190 = vector.broadcast %cst_76 : f32 to vector<16x1xf32>
    %191 = arith.divf %189, %190 : vector<16x1xf32>
    %192 = vector.broadcast %184 : vector<16x1xf32> to vector<16x32xf32>
    %193 = arith.subf %178, %192 : vector<16x32xf32>
    %cst_77 = arith.constant 9.99999974E-6 : f32
    %194 = vector.broadcast %cst_77 : f32 to vector<16x1xf32>
    %195 = arith.addf %191, %194 : vector<16x1xf32>
    %196 = math.rsqrt %195 : vector<16x1xf32>
    %197 = vector.broadcast %196 : vector<16x1xf32> to vector<16x32xf32>
    %198 = arith.mulf %193, %197 : vector<16x32xf32>
    %199 = vector.broadcast %179 : vector<1x32xf32> to vector<16x32xf32>
    %200 = arith.mulf %198, %199 : vector<16x32xf32>
    %201 = vector.broadcast %180 : vector<1x32xf32> to vector<16x32xf32>
    %202 = arith.addf %200, %201 : vector<16x32xf32>
    %c0_78 = arith.constant 0 : index
    %c0_79 = arith.constant 0 : index
    %203 = vector.load %arg10[%c0_78, %c0_79] : memref<16x32xf32, #tpu.memory_space<vmem>>, vector<16x32xf32>
    tpu.vector_store %arg10[%c0_78, %c0_79], %202 {strides = array<i32>} : memref<16x32xf32, #tpu.memory_space<vmem>>, vector<16x32xf32>,
    return
  }
  func.func @transform_0(%arg0: i32) -> (i32, i32) {
    %c0_i32 = arith.constant 0 : i32
    %c0_i32_0 = arith.constant 0 : i32
    %c0_i32_1 = arith.constant 0 : i32
    return %c0_i32, %c0_i32_0 : i32, i32
  }
  func.func @transform_1(%arg0: i32) -> (i32, i32) {
    %c0_i32 = arith.constant 0 : i32
    %c0_i32_0 = arith.constant 0 : i32
    %c0_i32_1 = arith.constant 0 : i32
    return %c0_i32, %c0_i32_0 : i32, i32
  }
  func.func @transform_2(%arg0: i32) -> (i32, i32) {
    %c0_i32 = arith.constant 0 : i32
    %c0_i32_0 = arith.constant 0 : i32
    %c0_i32_1 = arith.constant 0 : i32
    return %c0_i32, %c0_i32_0 : i32, i32
  }
  func.func @transform_3(%arg0: i32) -> (i32, i32) {
    %c0_i32 = arith.constant 0 : i32
    %c0_i32_0 = arith.constant 0 : i32
    %c0_i32_1 = arith.constant 0 : i32
    return %c0_i32, %c0_i32_0 : i32, i32
  }
  func.func @transform_4(%arg0: i32) -> (i32, i32) {
    %c0_i32 = arith.constant 0 : i32
    %c0_i32_0 = arith.constant 0 : i32
    %c0_i32_1 = arith.constant 0 : i32
    return %c0_i32, %c0_i32_0 : i32, i32
  }
  func.func @transform_5(%arg0: i32) -> (i32, i32) {
    %c0_i32 = arith.constant 0 : i32
    %c0_i32_0 = arith.constant 0 : i32
    %c0_i32_1 = arith.constant 0 : i32
    return %c0_i32, %c0_i32_0 : i32, i32
  }
  func.func @transform_6(%arg0: i32) -> (i32, i32) {
    %c0_i32 = arith.constant 0 : i32
    %c0_i32_0 = arith.constant 0 : i32
    %c0_i32_1 = arith.constant 0 : i32
    return %c0_i32, %c0_i32_0 : i32, i32
  }
  func.func @transform_7(%arg0: i32) -> (i32, i32) {
    %c0_i32 = arith.constant 0 : i32
    %c0_i32_0 = arith.constant 0 : i32
    %c0_i32_1 = arith.constant 0 : i32
    return %c0_i32, %c0_i32_0 : i32, i32
  }
  func.func @transform_8(%arg0: i32) -> (i32, i32) {
    %c0_i32 = arith.constant 0 : i32
    %c0_i32_0 = arith.constant 0 : i32
    %c0_i32_1 = arith.constant 0 : i32
    return %c0_i32, %c0_i32_0 : i32, i32
  }
  func.func @transform_9(%arg0: i32) -> (i32, i32) {
    %c0_i32 = arith.constant 0 : i32
    %c0_i32_0 = arith.constant 0 : i32
    %c0_i32_1 = arith.constant 0 : i32
    return %c0_i32, %c0_i32_0 : i32, i32
  }
}

</mosaic_0001>

<llo_original>
// kernel: tpu_custom_call.1
$region0: #{tpu_custom_call.1}
  #allocation0 [shape = 'u32[]', space=smem, size = 0x4, offset = 0x4, fixed_abs, tag = 'smem constant byte address 0x4 - core index']
  #allocation1 [shape = 'u32[144,128]{1,0:T(1,128)}', space=vmem, size = 0x12000, scoped, tag = 'internal scratch']
  #allocation2 [shape = 'f32[16,32]{1,0:T(8,128)}', space=vmem, size = 0x2000, scoped, tag = 'scratch operand']
  %s0 = inlined_call_operand.vmem [shape: f32[16,32], index: 0, kind: input, shape index: {}]
  %s1 = inlined_call_operand.vmem [shape: f32[1,32], index: 1, kind: input, shape index: {}]
  %s2 = inlined_call_operand.vmem [shape: f32[1,32], index: 2, kind: input, shape index: {}]
  %s3 = inlined_call_operand.vmem [shape: f32[1,32], index: 3, kind: input, shape index: {}]
  %s4 = inlined_call_operand.vmem [shape: f32[1,32], index: 4, kind: input, shape index: {}]
  %s5 = inlined_call_operand.vmem [shape: f32[32,64], index: 5, kind: input, shape index: {}]
  %s6 = inlined_call_operand.vmem [shape: f32[1,64], index: 6, kind: input, shape index: {}]
  %s7 = inlined_call_operand.vmem [shape: f32[64,32], index: 7, kind: input, shape index: {}]
  %s8 = inlined_call_operand.vmem [shape: f32[1,32], index: 8, kind: input, shape index: {}]
  %s9 = inlined_call_operand.hbm [shape: f32[16,32], index: 9, kind: output, shape index: {}]
  %s10 = sld [smem:[#allocation0]]
  $region46: #{tpu_custom_call.1} parent=0
    _
  %s12 = ssub.s32 1, %s10
  %s13 = scalar_select 0, %s12, %s10
  $region1: #{tpu_custom_call.1} parent=0
    #allocation3 [shape = 'u8[8192]{0}', space=vmem, size = 0x2000, scoped, tag = 'output window, operand 0, single buffered']
    #allocation4 [shape = 's32[1]{0}', space=sflag, size = 0x4, scoped, tag = 'scoped memory for tpu_custom_call.1']
    %14 = vsyncpa [#allocation4], 0
    // Predicated region
    $region2: #{tpu_custom_call.1} parent=1 // pred_check
      _
    $region3: #{tpu_custom_call.1} parent=1 // pred_check_branch
      %16 = sbr.rel (0) target = $region5
    $region4: #{tpu_custom_call.1} parent=1 // pred_region
      _
    $region5: #{tpu_custom_call.1} parent=1 // pred_fallthru
      _
    // Predicated region
    $region6: #{tpu_custom_call.1} parent=1 // pred_check
      _
    $region7: #{tpu_custom_call.1} parent=1 // pred_check_branch
      %18 = sbr.rel (0) target = $region9
    $region8: #{tpu_custom_call.1} parent=1 // pred_region
      _
    $region9: #{tpu_custom_call.1} parent=1 // pred_fallthru
      _
    // Predicated region
    $region10: #{tpu_custom_call.1} parent=1 // pred_check
      _
    $region11: #{tpu_custom_call.1} parent=1 // pred_check_branch
      %20 = sbr.rel (0) target = $region13
    $region12: #{tpu_custom_call.1} parent=1 // pred_region
      _
    $region13: #{tpu_custom_call.1} parent=1 // pred_fallthru
      _
    // Predicated region
    $region14: #{tpu_custom_call.1} parent=1 // pred_check
      _
    $region15: #{tpu_custom_call.1} parent=1 // pred_check_branch
      %22 = sbr.rel (0) target = $region17
    $region16: #{tpu_custom_call.1} parent=1 // pred_region
      _
    $region17: #{tpu_custom_call.1} parent=1 // pred_fallthru
      _
    // Predicated region
    $region18: #{tpu_custom_call.1} parent=1 // pred_check
      _
    $region19: #{tpu_custom_call.1} parent=1 // pred_check_branch
      %24 = sbr.rel (0) target = $region21
    $region20: #{tpu_custom_call.1} parent=1 // pred_region
      _
    $region21: #{tpu_custom_call.1} parent=1 // pred_fallthru
      _
    // Predicated region
    $region22: #{tpu_custom_call.1} parent=1 // pred_check
      _
    $region23: #{tpu_custom_call.1} parent=1 // pred_check_branch
      %26 = sbr.rel (0) target = $region25
    $region24: #{tpu_custom_call.1} parent=1 // pred_region
      _
    $region25: #{tpu_custom_call.1} parent=1 // pred_fallthru
      _
    // Predicated region
    $region26: #{tpu_custom_call.1} parent=1 // pred_check
      _
    $region27: #{tpu_custom_call.1} parent=1 // pred_check_branch
      %28 = sbr.rel (0) target = $region29
    $region28: #{tpu_custom_call.1} parent=1 // pred_region
      _
    $region29: #{tpu_custom_call.1} parent=1 // pred_fallthru
      _
    // Predicated region
    $region30: #{tpu_custom_call.1} parent=1 // pred_check
      _
    $region31: #{tpu_custom_call.1} parent=1 // pred_check_branch
      %30 = sbr.rel (0) target = $region33
    $region32: #{tpu_custom_call.1} parent=1 // pred_region
      _
    $region33: #{tpu_custom_call.1} parent=1 // pred_fallthru
      _
    // Predicated region
    $region34: #{tpu_custom_call.1} parent=1 // pred_check
      _
    $region35: #{tpu_custom_call.1} parent=1 // pred_check_branch
      %32 = sbr.rel (0) target = $region37
    $region36: #{tpu_custom_call.1} parent=1 // pred_region
      _
    $region37: #{tpu_custom_call.1} parent=1 // pred_fallthru
      _
    %v33 = vld [vmem:[%s0] sm:$0xff]
    %v34 = vld [vmem:[%s0 + $0x8] sm:$0xff]
    %v35 = vlaneseq
    %v36 = vshrl.u32 %v35, 7
    %v37 = vlaneseq
    %v38 = vand.u32 %v37, 127
    %v39 = vsub.s32 %v36, %v38
    %vm40 = vcmp.lt.s32.totalorder %v39, 0
    %v41 = vsub.s32 0, %v39
    %v42 = vsel %vm40, %v41, %v39
    %vm43 = vcmp.le.s32.totalorder %v42, 2
    %v44 = vsel %vm43, 0.0, -1e+09
    %vm45 = vcmask 64512
    %v47 = vsel %vm45, %v33, 0
    %49 = vmatprep.subr.mxu0 0.0
    %50 = vmatpush1.xpose.msra.mxu0 %v47
    %51 = vmatprep.subr.mxu0 0.0
    %52 = vmatpush1.xpose.msra.mxu0 0.0
    %53 = vmatprep.subr.mxu0 0.0
    %54 = vmatpush1.xpose.msra.mxu0 0.0
    %55 = vmatprep.subr.mxu0 0.0
    %56 = vmatpush1.xpose.msra.mxu0 0.0
    %57 = vmatprep.subr.mxu0 0.0
    %58 = vmatpush1.xpose.msra.mxu0 0.0
    %59 = vmatprep.subr.mxu0 0.0
    %60 = vmatpush1.xpose.msra.mxu0 0.0
    %61 = vmatprep.subr.mxu0 0.0
    %62 = vmatpush1.xpose.msra.mxu0 0.0
    %63 = vmatprep.subr.mxu0 0.0
    %64 = vmatpush1.xpose.msra.mxu0 0.0
    %65 = vmatprep.subr.mxu0 0.0
    %66 = vmatpush1.xpose.msra.mxu0 0.0
    %67 = vmatprep.subr.mxu0 0.0
    %68 = vmatpush1.xpose.msra.mxu0 0.0
    %69 = vmatprep.subr.mxu0 0.0
    %70 = vmatpush1.xpose.msra.mxu0 0.0
    %71 = vmatprep.subr.mxu0 0.0
    %72 = vmatpush1.xpose.msra.mxu0 0.0
    %73 = vmatprep.subr.mxu0 0.0
    %74 = vmatpush1.xpose.msra.mxu0 0.0
    %75 = vmatprep.subr.mxu0 0.0
    %76 = vmatpush1.xpose.msra.mxu0 0.0
    %77 = vmatprep.subr.mxu0 0.0
    %78 = vmatpush1.xpose.msra.mxu0 0.0
    %79 = vmatprep.subr.mxu0 0.0
    %80 = vmatpush1.xpose.msra.mxu0 0.0
    %81 = vmatprep.subr.mxu0 0.0
    %82 = vmatpush1.xpose.msra.mxu0 0.0
    %83 = vmatprep.subr.mxu0 0.0
    %84 = vmatpush1.xpose.msra.mxu0 0.0
    %85 = vmatprep.subr.mxu0 0.0
    %86 = vmatpush1.xpose.msra.mxu0 0.0
    %87 = vmatprep.subr.mxu0 0.0
    %88 = vmatpush1.xpose.msra.mxu0 0.0
    %89 = vmatprep.subr.mxu0 0.0
    %90 = vmatpush1.xpose.msra.mxu0 0.0
    %91 = vmatprep.subr.mxu0 0.0
    %92 = vmatpush1.xpose.msra.mxu0 0.0
    %93 = vmatprep.subr.mxu0 0.0
    %94 = vmatpush1.xpose.msra.mxu0 0.0
    %95 = vmatprep.subr.mxu0 0.0
    %96 = vmatpush1.xpose.msra.mxu0 0.0
    %97 = vmatprep.subr.mxu0 0.0
    %98 = vmatpush1.xpose.msra.mxu0 0.0
    %99 = vmatprep.subr.mxu0 0.0
    %100 = vmatpush1.xpose.msra.mxu0 0.0
    %101 = vmatprep.subr.mxu0 0.0
    %102 = vmatpush1.xpose.msra.mxu0 0.0
    %103 = vmatprep.subr.mxu0 0.0
    %104 = vmatpush1.xpose.msra.mxu0 0.0
    %105 = vmatprep.subr.mxu0 0.0
    %106 = vmatpush1.xpose.msra.mxu0 0.0
    %107 = vmatprep.subr.mxu0 0.0
    %108 = vmatpush1.xpose.msra.mxu0 0.0
    %109 = vmatprep.subr.mxu0 0.0
    %110 = vmatpush1.xpose.msra.mxu0 0.0
    %111 = vmatprep.subr.mxu0 0.0
    %112 = vmatpush1.xpose.msra.mxu0 0.0
    %113 = vmatprep.mubr.f32.mxu0 0.0
    %114 = vmatmul.mubr.f32.gmra.mrb[0].mxu0 %v47
    %v115 = vpop.f32.mrb[0].mxu0
    %v116 = vadd.f32 %v44, %v115
    %v117 = vpop.f32.mrb[0].mxu0
    %118 = vdwg.mxu0
    %v119 = vsel %vm45, %v116, -inf
    %120 = vmax.xlane.f32.xlu0 %v119
    %v121 = vpop.xlane.xlu0 %120
    %v122 = vsub.f32 %v116, %v121
    %v123 = vmul.f32 %v122, 1.442695
    %v124 = vpow.pop %v123
    %v125 = vsel %vm45, %v124, 0.0
    %126 = vadd.xlane.f32.xlu0 %v125
    %v127 = vpop.xlane.xlu0 %126
    %v128 = vrcp.pop %v127
    %v129 = vmul.f32 %v124, %v128
    %v131 = vsel %vm45, %v129, 0
    %133 = vmatprep.subr.mxu0 0.0
    %134 = vmatpush1.msra.mxu0 %v33
    %135 = vmatprep.subr.mxu0 0.0
    %136 = vmatpush1.msra.mxu0 0.0
    %137 = vmatprep.subr.mxu0 0.0
    %138 = vmatpush1.msra.mxu0 0.0
    %139 = vmatprep.subr.mxu0 0.0
    %140 = vmatpush1.msra.mxu0 0.0
    %141 = vmatprep.subr.mxu0 0.0
    %142 = vmatpush1.msra.mxu0 0.0
    %143 = vmatprep.subr.mxu0 0.0
    %144 = vmatpush1.msra.mxu0 0.0
    %145 = vmatprep.subr.mxu0 0.0
    %146 = vmatpush1.msra.mxu0 0.0
    %147 = vmatprep.subr.mxu0 0.0
    %148 = vmatpush1.msra.mxu0 0.0
    %149 = vmatprep.subr.mxu0 0.0
    %150 = vmatpush1.msra.mxu0 0.0
    %151 = vmatprep.subr.mxu0 0.0
    %152 = vmatpush1.msra.mxu0 0.0
    %153 = vmatprep.subr.mxu0 0.0
    %154 = vmatpush1.msra.mxu0 0.0
    %155 = vmatprep.subr.mxu0 0.0
    %156 = vmatpush1.msra.mxu0 0.0
    %157 = vmatprep.subr.mxu0 0.0
    %158 = vmatpush1.msra.mxu0 0.0
    %159 = vmatprep.subr.mxu0 0.0
    %160 = vmatpush1.msra.mxu0 0.0
    %161 = vmatprep.subr.mxu0 0.0
    %162 = vmatpush1.msra.mxu0 0.0
    %163 = vmatprep.subr.mxu0 0.0
    %164 = vmatpush1.msra.mxu0 0.0
    %165 = vmatprep.subr.mxu0 0.0
    %166 = vmatpush1.msra.mxu0 0.0
    %167 = vmatprep.subr.mxu0 0.0
    %168 = vmatpush1.msra.mxu0 0.0
    %169 = vmatprep.subr.mxu0 0.0
    %170 = vmatpush1.msra.mxu0 0.0
    %171 = vmatprep.subr.mxu0 0.0
    %172 = vmatpush1.msra.mxu0 0.0
    %173 = vmatprep.subr.mxu0 0.0
    %174 = vmatpush1.msra.mxu0 0.0
    %175 = vmatprep.subr.mxu0 0.0
    %176 = vmatpush1.msra.mxu0 0.0
    %177 = vmatprep.subr.mxu0 0.0
    %178 = vmatpush1.msra.mxu0 0.0
    %179 = vmatprep.subr.mxu0 0.0
    %180 = vmatpush1.msra.mxu0 0.0
    %181 = vmatprep.subr.mxu0 0.0
    %182 = vmatpush1.msra.mxu0 0.0
    %183 = vmatprep.subr.mxu0 0.0
    %184 = vmatpush1.msra.mxu0 0.0
    %185 = vmatprep.subr.mxu0 0.0
    %186 = vmatpush1.msra.mxu0 0.0
    %187 = vmatprep.subr.mxu0 0.0
    %188 = vmatpush1.msra.mxu0 0.0
    %189 = vmatprep.subr.mxu0 0.0
    %190 = vmatpush1.msra.mxu0 0.0
    %191 = vmatprep.subr.mxu0 0.0
    %192 = vmatpush1.msra.mxu0 0.0
    %193 = vmatprep.subr.mxu0 0.0
    %194 = vmatpush1.msra.mxu0 0.0
    %195 = vmatprep.subr.mxu0 0.0
    %196 = vmatpush1.msra.mxu0 0.0
    %197 = vmatprep.mubr.f32.mxu0 0.0
    %198 = vmatmul.mubr.f32.gmra.mrb[0].mxu0 %v131
    %v199 = vpop.f32.mrb[0].mxu0
    %v200 = vadd.f32 0.0, %v199
    %v201 = vpop.f32.mrb[0].mxu0
    %202 = vdwg.mxu0
    %203 = vst.msk [vmem:[#allocation2] sm:$0xff] %vm45, %v200
    %204 = vrot.lane.b32.xlu0 %v33, 120
    %v205 = vpop.permute.xlu0 %204
    %v206 = vsel %vm45, %v205, 0
    %208 = vmatprep.subr.mxu0 0.0
    %209 = vmatpush1.xpose.msra.mxu0 %v206
    %210 = vmatprep.subr.mxu0 0.0
    %211 = vmatpush1.xpose.msra.mxu0 0.0
    %212 = vmatprep.subr.mxu0 0.0
    %213 = vmatpush1.xpose.msra.mxu0 0.0
    %214 = vmatprep.subr.mxu0 0.0
    %215 = vmatpush1.xpose.msra.mxu0 0.0
    %216 = vmatprep.subr.mxu0 0.0
    %217 = vmatpush1.xpose.msra.mxu0 0.0
    %218 = vmatprep.subr.mxu0 0.0
    %219 = vmatpush1.xpose.msra.mxu0 0.0
    %220 = vmatprep.subr.mxu0 0.0
    %221 = vmatpush1.xpose.msra.mxu0 0.0
    %222 = vmatprep.subr.mxu0 0.0
    %223 = vmatpush1.xpose.msra.mxu0 0.0
    %224 = vmatprep.subr.mxu0 0.0
    %225 = vmatpush1.xpose.msra.mxu0 0.0
    %226 = vmatprep.subr.mxu0 0.0
    %227 = vmatpush1.xpose.msra.mxu0 0.0
    %228 = vmatprep.subr.mxu0 0.0
    %229 = vmatpush1.xpose.msra.mxu0 0.0
    %230 = vmatprep.subr.mxu0 0.0
    %231 = vmatpush1.xpose.msra.mxu0 0.0
    %232 = vmatprep.subr.mxu0 0.0
    %233 = vmatpush1.xpose.msra.mxu0 0.0
    %234 = vmatprep.subr.mxu0 0.0
    %235 = vmatpush1.xpose.msra.mxu0 0.0
    %236 = vmatprep.subr.mxu0 0.0
    %237 = vmatpush1.xpose.msra.mxu0 0.0
    %238 = vmatprep.subr.mxu0 0.0
    %239 = vmatpush1.xpose.msra.mxu0 0.0
    %240 = vmatprep.subr.mxu0 0.0
    %241 = vmatpush1.xpose.msra.mxu0 0.0
    %242 = vmatprep.subr.mxu0 0.0
    %243 = vmatpush1.xpose.msra.mxu0 0.0
    %244 = vmatprep.subr.mxu0 0.0
    %245 = vmatpush1.xpose.msra.mxu0 0.0
    %246 = vmatprep.subr.mxu0 0.0
    %247 = vmatpush1.xpose.msra.mxu0 0.0
    %248 = vmatprep.subr.mxu0 0.0
    %249 = vmatpush1.xpose.msra.mxu0 0.0
    %250 = vmatprep.subr.mxu0 0.0
    %251 = vmatpush1.xpose.msra.mxu0 0.0
    %252 = vmatprep.subr.mxu0 0.0
    %253 = vmatpush1.xpose.msra.mxu0 0.0
    %254 = vmatprep.subr.mxu0 0.0
    %255 = vmatpush1.xpose.msra.mxu0 0.0
    %256 = vmatprep.subr.mxu0 0.0
    %257 = vmatpush1.xpose.msra.mxu0 0.0
    %258 = vmatprep.subr.mxu0 0.0
    %259 = vmatpush1.xpose.msra.mxu0 0.0
    %260 = vmatprep.subr.mxu0 0.0
    %261 = vmatpush1.xpose.msra.mxu0 0.0
    %262 = vmatprep.subr.mxu0 0.0
    %263 = vmatpush1.xpose.msra.mxu0 0.0
    %264 = vmatprep.subr.mxu0 0.0
    %265 = vmatpush1.xpose.msra.mxu0 0.0
    %266 = vmatprep.subr.mxu0 0.0
    %267 = vmatpush1.xpose.msra.mxu0 0.0
    %268 = vmatprep.subr.mxu0 0.0
    %269 = vmatpush1.xpose.msra.mxu0 0.0
    %270 = vmatprep.subr.mxu0 0.0
    %271 = vmatpush1.xpose.msra.mxu0 0.0
    %272 = vmatprep.mubr.f32.mxu0 0.0
    %273 = vmatmul.mubr.f32.gmra.mrb[0].mxu0 %v206
    %v274 = vpop.f32.mrb[0].mxu0
    %v275 = vadd.f32 %v44, %v274
    %v276 = vpop.f32.mrb[0].mxu0
    %277 = vdwg.mxu0
    %v278 = vsel %vm45, %v275, -inf
    %279 = vmax.xlane.f32.xlu0 %v278
    %v280 = vpop.xlane.xlu0 %279
    %v281 = vsub.f32 %v275, %v280
    %v282 = vmul.f32 %v281, 1.442695
    %v283 = vpow.pop %v282
    %v284 = vsel %vm45, %v283, 0.0
    %285 = vadd.xlane.f32.xlu0 %v284
    %v286 = vpop.xlane.xlu0 %285
    %v287 = vrcp.pop %v286
    %v288 = vmul.f32 %v283, %v287
    %v291 = vsel %vm45, %v288, 0
    %293 = vmatprep.subr.mxu0 0.0
    %294 = vmatpush1.msra.mxu0 %v205
    %295 = vmatprep.subr.mxu0 0.0
    %296 = vmatpush1.msra.mxu0 0.0
    %297 = vmatprep.subr.mxu0 0.0
    %298 = vmatpush1.msra.mxu0 0.0
    %299 = vmatprep.subr.mxu0 0.0
    %300 = vmatpush1.msra.mxu0 0.0
    %301 = vmatprep.subr.mxu0 0.0
    %302 = vmatpush1.msra.mxu0 0.0
    %303 = vmatprep.subr.mxu0 0.0
    %304 = vmatpush1.msra.mxu0 0.0
    %305 = vmatprep.subr.mxu0 0.0
    %306 = vmatpush1.msra.mxu0 0.0
    %307 = vmatprep.subr.mxu0 0.0
    %308 = vmatpush1.msra.mxu0 0.0
    %309 = vmatprep.subr.mxu0 0.0
    %310 = vmatpush1.msra.mxu0 0.0
    %311 = vmatprep.subr.mxu0 0.0
    %312 = vmatpush1.msra.mxu0 0.0
    %313 = vmatprep.subr.mxu0 0.0
    %314 = vmatpush1.msra.mxu0 0.0
    %315 = vmatprep.subr.mxu0 0.0
    %316 = vmatpush1.msra.mxu0 0.0
    %317 = vmatprep.subr.mxu0 0.0
    %318 = vmatpush1.msra.mxu0 0.0
    %319 = vmatprep.subr.mxu0 0.0
    %320 = vmatpush1.msra.mxu0 0.0
    %321 = vmatprep.subr.mxu0 0.0
    %322 = vmatpush1.msra.mxu0 0.0
    %323 = vmatprep.subr.mxu0 0.0
    %324 = vmatpush1.msra.mxu0 0.0
    %325 = vmatprep.subr.mxu0 0.0
    %326 = vmatpush1.msra.mxu0 0.0
    %327 = vmatprep.subr.mxu0 0.0
    %328 = vmatpush1.msra.mxu0 0.0
    %329 = vmatprep.subr.mxu0 0.0
    %330 = vmatpush1.msra.mxu0 0.0
    %331 = vmatprep.subr.mxu0 0.0
    %332 = vmatpush1.msra.mxu0 0.0
    %333 = vmatprep.subr.mxu0 0.0
    %334 = vmatpush1.msra.mxu0 0.0
    %335 = vmatprep.subr.mxu0 0.0
    %336 = vmatpush1.msra.mxu0 0.0
    %337 = vmatprep.subr.mxu0 0.0
    %338 = vmatpush1.msra.mxu0 0.0
    %339 = vmatprep.subr.mxu0 0.0
    %340 = vmatpush1.msra.mxu0 0.0
    %341 = vmatprep.subr.mxu0 0.0
    %342 = vmatpush1.msra.mxu0 0.0
    %343 = vmatprep.subr.mxu0 0.0
    %344 = vmatpush1.msra.mxu0 0.0
    %345 = vmatprep.subr.mxu0 0.0
    %346 = vmatpush1.msra.mxu0 0.0
    %347 = vmatprep.subr.mxu0 0.0
    %348 = vmatpush1.msra.mxu0 0.0
    %349 = vmatprep.subr.mxu0 0.0
    %350 = vmatpush1.msra.mxu0 0.0
    %351 = vmatprep.subr.mxu0 0.0
    %352 = vmatpush1.msra.mxu0 0.0
    %353 = vmatprep.subr.mxu0 0.0
    %354 = vmatpush1.msra.mxu0 0.0
    %355 = vmatprep.subr.mxu0 0.0
    %356 = vmatpush1.msra.mxu0 0.0
    %357 = vmatprep.mubr.f32.mxu0 0.0
    %358 = vmatmul.mubr.f32.gmra.mrb[0].mxu0 %v291
    %v359 = vpop.f32.mrb[0].mxu0
    %v360 = vadd.f32 0.0, %v359
    %v361 = vpop.f32.mrb[0].mxu0
    %362 = vdwg.mxu0
    %364 = vrot.lane.b32.xlu0 %v360, 8
    %v365 = vpop.permute.xlu0 %364
    %vm367 = vcmask 130112
    %368 = vst.msk [vmem:[#allocation2] sm:$0xff] %vm367, %v365
    %369 = vrot.lane.b32.xlu0 %v33, 112
    %v370 = vpop.permute.xlu0 %369
    %v371 = vsel %vm45, %v370, 0
    %373 = vmatprep.subr.mxu0 0.0
    %374 = vmatpush1.xpose.msra.mxu0 %v371
    %375 = vmatprep.subr.mxu0 0.0
    %376 = vmatpush1.xpose.msra.mxu0 0.0
    %377 = vmatprep.subr.mxu0 0.0
    %378 = vmatpush1.xpose.msra.mxu0 0.0
    %379 = vmatprep.subr.mxu0 0.0
    %380 = vmatpush1.xpose.msra.mxu0 0.0
    %381 = vmatprep.subr.mxu0 0.0
    %382 = vmatpush1.xpose.msra.mxu0 0.0
    %383 = vmatprep.subr.mxu0 0.0
    %384 = vmatpush1.xpose.msra.mxu0 0.0
    %385 = vmatprep.subr.mxu0 0.0
    %386 = vmatpush1.xpose.msra.mxu0 0.0
    %387 = vmatprep.subr.mxu0 0.0
    %388 = vmatpush1.xpose.msra.mxu0 0.0
    %389 = vmatprep.subr.mxu0 0.0
    %390 = vmatpush1.xpose.msra.mxu0 0.0
    %391 = vmatprep.subr.mxu0 0.0
    %392 = vmatpush1.xpose.msra.mxu0 0.0
    %393 = vmatprep.subr.mxu0 0.0
    %394 = vmatpush1.xpose.msra.mxu0 0.0
    %395 = vmatprep.subr.mxu0 0.0
    %396 = vmatpush1.xpose.msra.mxu0 0.0
    %397 = vmatprep.subr.mxu0 0.0
    %398 = vmatpush1.xpose.msra.mxu0 0.0
    %399 = vmatprep.subr.mxu0 0.0
    %400 = vmatpush1.xpose.msra.mxu0 0.0
    %401 = vmatprep.subr.mxu0 0.0
    %402 = vmatpush1.xpose.msra.mxu0 0.0
    %403 = vmatprep.subr.mxu0 0.0
    %404 = vmatpush1.xpose.msra.mxu0 0.0
    %405 = vmatprep.subr.mxu0 0.0
    %406 = vmatpush1.xpose.msra.mxu0 0.0
    %407 = vmatprep.subr.mxu0 0.0
    %408 = vmatpush1.xpose.msra.mxu0 0.0
    %409 = vmatprep.subr.mxu0 0.0
    %410 = vmatpush1.xpose.msra.mxu0 0.0
    %411 = vmatprep.subr.mxu0 0.0
    %412 = vmatpush1.xpose.msra.mxu0 0.0
    %413 = vmatprep.subr.mxu0 0.0
    %414 = vmatpush1.xpose.msra.mxu0 0.0
    %415 = vmatprep.subr.mxu0 0.0
    %416 = vmatpush1.xpose.msra.mxu0 0.0
    %417 = vmatprep.subr.mxu0 0.0
    %418 = vmatpush1.xpose.msra.mxu0 0.0
    %419 = vmatprep.subr.mxu0 0.0
    %420 = vmatpush1.xpose.msra.mxu0 0.0
    %421 = vmatprep.subr.mxu0 0.0
    %422 = vmatpush1.xpose.msra.mxu0 0.0
    %423 = vmatprep.subr.mxu0 0.0
    %424 = vmatpush1.xpose.msra.mxu0 0.0
    %425 = vmatprep.subr.mxu0 0.0
    %426 = vmatpush1.xpose.msra.mxu0 0.0
    %427 = vmatprep.subr.mxu0 0.0
    %428 = vmatpush1.xpose.msra.mxu0 0.0
    %429 = vmatprep.subr.mxu0 0.0
    %430 = vmatpush1.xpose.msra.mxu0 0.0
    %431 = vmatprep.subr.mxu0 0.0
    %432 = vmatpush1.xpose.msra.mxu0 0.0
    %433 = vmatprep.subr.mxu0 0.0
    %434 = vmatpush1.xpose.msra.mxu0 0.0
    %435 = vmatprep.subr.mxu0 0.0
    %436 = vmatpush1.xpose.msra.mxu0 0.0
    %437 = vmatprep.mubr.f32.mxu0 0.0
    %438 = vmatmul.mubr.f32.gmra.mrb[0].mxu0 %v371
    %v439 = vpop.f32.mrb[0].mxu0
    %v440 = vadd.f32 %v44, %v439
    %v441 = vpop.f32.mrb[0].mxu0
    %442 = vdwg.mxu0
    %v443 = vsel %vm45, %v440, -inf
    %444 = vmax.xlane.f32.xlu0 %v443
    %v445 = vpop.xlane.xlu0 %444
    %v446 = vsub.f32 %v440, %v445
    %v447 = vmul.f32 %v446, 1.442695
    %v448 = vpow.pop %v447
    %v449 = vsel %vm45, %v448, 0.0
    %450 = vadd.xlane.f32.xlu0 %v449
    %v451 = vpop.xlane.xlu0 %450
    %v452 = vrcp.pop %v451
    %v453 = vmul.f32 %v448, %v452
    %v456 = vsel %vm45, %v453, 0
    %458 = vmatprep.subr.mxu0 0.0
    %459 = vmatpush1.msra.mxu0 %v370
    %460 = vmatprep.subr.mxu0 0.0
    %461 = vmatpush1.msra.mxu0 0.0
    %462 = vmatprep.subr.mxu0 0.0
    %463 = vmatpush1.msra.mxu0 0.0
    %464 = vmatprep.subr.mxu0 0.0
    %465 = vmatpush1.msra.mxu0 0.0
    %466 = vmatprep.subr.mxu0 0.0
    %467 = vmatpush1.msra.mxu0 0.0
    %468 = vmatprep.subr.mxu0 0.0
    %469 = vmatpush1.msra.mxu0 0.0
    %470 = vmatprep.subr.mxu0 0.0
    %471 = vmatpush1.msra.mxu0 0.0
    %472 = vmatprep.subr.mxu0 0.0
    %473 = vmatpush1.msra.mxu0 0.0
    %474 = vmatprep.subr.mxu0 0.0
    %475 = vmatpush1.msra.mxu0 0.0
    %476 = vmatprep.subr.mxu0 0.0
    %477 = vmatpush1.msra.mxu0 0.0
    %478 = vmatprep.subr.mxu0 0.0
    %479 = vmatpush1.msra.mxu0 0.0
    %480 = vmatprep.subr.mxu0 0.0
    %481 = vmatpush1.msra.mxu0 0.0
    %482 = vmatprep.subr.mxu0 0.0
    %483 = vmatpush1.msra.mxu0 0.0
    %484 = vmatprep.subr.mxu0 0.0
    %485 = vmatpush1.msra.mxu0 0.0
    %486 = vmatprep.subr.mxu0 0.0
    %487 = vmatpush1.msra.mxu0 0.0
    %488 = vmatprep.subr.mxu0 0.0
    %489 = vmatpush1.msra.mxu0 0.0
    %490 = vmatprep.subr.mxu0 0.0
    %491 = vmatpush1.msra.mxu0 0.0
    %492 = vmatprep.subr.mxu0 0.0
    %493 = vmatpush1.msra.mxu0 0.0
    %494 = vmatprep.subr.mxu0 0.0
    %495 = vmatpush1.msra.mxu0 0.0
    %496 = vmatprep.subr.mxu0 0.0
    %497 = vmatpush1.msra.mxu0 0.0
    %498 = vmatprep.subr.mxu0 0.0
    %499 = vmatpush1.msra.mxu0 0.0
    %500 = vmatprep.subr.mxu0 0.0
    %501 = vmatpush1.msra.mxu0 0.0
    %502 = vmatprep.subr.mxu0 0.0
    %503 = vmatpush1.msra.mxu0 0.0
    %504 = vmatprep.subr.mxu0 0.0
    %505 = vmatpush1.msra.mxu0 0.0
    %506 = vmatprep.subr.mxu0 0.0
    %507 = vmatpush1.msra.mxu0 0.0
    %508 = vmatprep.subr.mxu0 0.0
    %509 = vmatpush1.msra.mxu0 0.0
    %510 = vmatprep.subr.mxu0 0.0
    %511 = vmatpush1.msra.mxu0 0.0
    %512 = vmatprep.subr.mxu0 0.0
    %513 = vmatpush1.msra.mxu0 0.0
    %514 = vmatprep.subr.mxu0 0.0
    %515 = vmatpush1.msra.mxu0 0.0
    %516 = vmatprep.subr.mxu0 0.0
    %517 = vmatpush1.msra.mxu0 0.0
    %518 = vmatprep.subr.mxu0 0.0
    %519 = vmatpush1.msra.mxu0 0.0
    %520 = vmatprep.subr.mxu0 0.0
    %521 = vmatpush1.msra.mxu0 0.0
    %522 = vmatprep.mubr.f32.mxu0 0.0
    %523 = vmatmul.mubr.f32.gmra.mrb[0].mxu0 %v456
    %v524 = vpop.f32.mrb[0].mxu0
    %v525 = vadd.f32 0.0, %v524
    %v526 = vpop.f32.mrb[0].mxu0
    %527 = vdwg.mxu0
    %529 = vrot.lane.b32.xlu0 %v525, 16
    %v530 = vpop.permute.xlu0 %529
    %vm532 = vcmask 195712
    %533 = vst.msk [vmem:[#allocation2] sm:$0xff] %vm532, %v530
    %534 = vrot.lane.b32.xlu0 %v33, 104
    %v535 = vpop.permute.xlu0 %534
    %v536 = vsel %vm45, %v535, 0
    %538 = vmatprep.subr.mxu0 0.0
    %539 = vmatpush1.xpose.msra.mxu0 %v536
    %540 = vmatprep.subr.mxu0 0.0
    %541 = vmatpush1.xpose.msra.mxu0 0.0
    %542 = vmatprep.subr.mxu0 0.0
    %543 = vmatpush1.xpose.msra.mxu0 0.0
    %544 = vmatprep.subr.mxu0 0.0
    %545 = vmatpush1.xpose.msra.mxu0 0.0
    %546 = vmatprep.subr.mxu0 0.0
    %547 = vmatpush1.xpose.msra.mxu0 0.0
    %548 = vmatprep.subr.mxu0 0.0
    %549 = vmatpush1.xpose.msra.mxu0 0.0
    %550 = vmatprep.subr.mxu0 0.0
    %551 = vmatpush1.xpose.msra.mxu0 0.0
    %552 = vmatprep.subr.mxu0 0.0
    %553 = vmatpush1.xpose.msra.mxu0 0.0
    %554 = vmatprep.subr.mxu0 0.0
    %555 = vmatpush1.xpose.msra.mxu0 0.0
    %556 = vmatprep.subr.mxu0 0.0
    %557 = vmatpush1.xpose.msra.mxu0 0.0
    %558 = vmatprep.subr.mxu0 0.0
    %559 = vmatpush1.xpose.msra.mxu0 0.0
    %560 = vmatprep.subr.mxu0 0.0
    %561 = vmatpush1.xpose.msra.mxu0 0.0
    %562 = vmatprep.subr.mxu0 0.0
    %563 = vmatpush1.xpose.msra.mxu0 0.0
    %564 = vmatprep.subr.mxu0 0.0
    %565 = vmatpush1.xpose.msra.mxu0 0.0
    %566 = vmatprep.subr.mxu0 0.0
    %567 = vmatpush1.xpose.msra.mxu0 0.0
    %568 = vmatprep.subr.mxu0 0.0
    %569 = vmatpush1.xpose.msra.mxu0 0.0
    %570 = vmatprep.subr.mxu0 0.0
    %571 = vmatpush1.xpose.msra.mxu0 0.0
    %572 = vmatprep.subr.mxu0 0.0
    %573 = vmatpush1.xpose.msra.mxu0 0.0
    %574 = vmatprep.subr.mxu0 0.0
    %575 = vmatpush1.xpose.msra.mxu0 0.0
    %576 = vmatprep.subr.mxu0 0.0
    %577 = vmatpush1.xpose.msra.mxu0 0.0
    %578 = vmatprep.subr.mxu0 0.0
    %579 = vmatpush1.xpose.msra.mxu0 0.0
    %580 = vmatprep.subr.mxu0 0.0
    %581 = vmatpush1.xpose.msra.mxu0 0.0
    %582 = vmatprep.subr.mxu0 0.0
    %583 = vmatpush1.xpose.msra.mxu0 0.0
    %584 = vmatprep.subr.mxu0 0.0
    %585 = vmatpush1.xpose.msra.mxu0 0.0
    %586 = vmatprep.subr.mxu0 0.0
    %587 = vmatpush1.xpose.msra.mxu0 0.0
    %588 = vmatprep.subr.mxu0 0.0
    %589 = vmatpush1.xpose.msra.mxu0 0.0
    %590 = vmatprep.subr.mxu0 0.0
    %591 = vmatpush1.xpose.msra.mxu0 0.0
    %592 = vmatprep.subr.mxu0 0.0
    %593 = vmatpush1.xpose.msra.mxu0 0.0
    %594 = vmatprep.subr.mxu0 0.0
    %595 = vmatpush1.xpose.msra.mxu0 0.0
    %596 = vmatprep.subr.mxu0 0.0
    %597 = vmatpush1.xpose.msra.mxu0 0.0
    %598 = vmatprep.subr.mxu0 0.0
    %599 = vmatpush1.xpose.msra.mxu0 0.0
    %600 = vmatprep.subr.mxu0 0.0
    %601 = vmatpush1.xpose.msra.mxu0 0.0
    %602 = vmatprep.mubr.f32.mxu0 0.0
    %603 = vmatmul.mubr.f32.gmra.mrb[0].mxu0 %v536
    %v604 = vpop.f32.mrb[0].mxu0
    %v605 = vadd.f32 %v44, %v604
    %v606 = vpop.f32.mrb[0].mxu0
    %607 = vdwg.mxu0
    %v608 = vsel %vm45, %v605, -inf
    %609 = vmax.xlane.f32.xlu0 %v608
    %v610 = vpop.xlane.xlu0 %609
    %v611 = vsub.f32 %v605, %v610
    %v612 = vmul.f32 %v611, 1.442695
    %v613 = vpow.pop %v612
    %v614 = vsel %vm45, %v613, 0.0
    %615 = vadd.xlane.f32.xlu0 %v614
    %v616 = vpop.xlane.xlu0 %615
    %v617 = vrcp.pop %v616
    %v618 = vmul.f32 %v613, %v617
    %v621 = vsel %vm45, %v618, 0
    %623 = vmatprep.subr.mxu0 0.0
    %624 = vmatpush1.msra.mxu0 %v535
    %625 = vmatprep.subr.mxu0 0.0
    %626 = vmatpush1.msra.mxu0 0.0
    %627 = vmatprep.subr.mxu0 0.0
    %628 = vmatpush1.msra.mxu0 0.0
    %629 = vmatprep.subr.mxu0 0.0
    %630 = vmatpush1.msra.mxu0 0.0
    %631 = vmatprep.subr.mxu0 0.0
    %632 = vmatpush1.msra.mxu0 0.0
    %633 = vmatprep.subr.mxu0 0.0
    %634 = vmatpush1.msra.mxu0 0.0
    %635 = vmatprep.subr.mxu0 0.0
    %636 = vmatpush1.msra.mxu0 0.0
    %637 = vmatprep.subr.mxu0 0.0
    %638 = vmatpush1.msra.mxu0 0.0
    %639 = vmatprep.subr.mxu0 0.0
    %640 = vmatpush1.msra.mxu0 0.0
    %641 = vmatprep.subr.mxu0 0.0
    %642 = vmatpush1.msra.mxu0 0.0
    %643 = vmatprep.subr.mxu0 0.0
    %644 = vmatpush1.msra.mxu0 0.0
    %645 = vmatprep.subr.mxu0 0.0
    %646 = vmatpush1.msra.mxu0 0.0
    %647 = vmatprep.subr.mxu0 0.0
    %648 = vmatpush1.msra.mxu0 0.0
    %649 = vmatprep.subr.mxu0 0.0
    %650 = vmatpush1.msra.mxu0 0.0
    %651 = vmatprep.subr.mxu0 0.0
    %652 = vmatpush1.msra.mxu0 0.0
    %653 = vmatprep.subr.mxu0 0.0
    %654 = vmatpush1.msra.mxu0 0.0
    %655 = vmatprep.subr.mxu0 0.0
    %656 = vmatpush1.msra.mxu0 0.0
    %657 = vmatprep.subr.mxu0 0.0
    %658 = vmatpush1.msra.mxu0 0.0
    %659 = vmatprep.subr.mxu0 0.0
    %660 = vmatpush1.msra.mxu0 0.0
    %661 = vmatprep.subr.mxu0 0.0
    %662 = vmatpush1.msra.mxu0 0.0
    %663 = vmatprep.subr.mxu0 0.0
    %664 = vmatpush1.msra.mxu0 0.0
    %665 = vmatprep.subr.mxu0 0.0
    %666 = vmatpush1.msra.mxu0 0.0
    %667 = vmatprep.subr.mxu0 0.0
    %668 = vmatpush1.msra.mxu0 0.0
    %669 = vmatprep.subr.mxu0 0.0
    %670 = vmatpush1.msra.mxu0 0.0
    %671 = vmatprep.subr.mxu0 0.0
    %672 = vmatpush1.msra.mxu0 0.0
    %673 = vmatprep.subr.mxu0 0.0
    %674 = vmatpush1.msra.mxu0 0.0
    %675 = vmatprep.subr.mxu0 0.0
    %676 = vmatpush1.msra.mxu0 0.0
    %677 = vmatprep.subr.mxu0 0.0
    %678 = vmatpush1.msra.mxu0 0.0
    %679 = vmatprep.subr.mxu0 0.0
    %680 = vmatpush1.msra.mxu0 0.0
    %681 = vmatprep.subr.mxu0 0.0
    %682 = vmatpush1.msra.mxu0 0.0
    %683 = vmatprep.subr.mxu0 0.0
    %684 = vmatpush1.msra.mxu0 0.0
    %685 = vmatprep.subr.mxu0 0.0
    %686 = vmatpush1.msra.mxu0 0.0
    %687 = vmatprep.mubr.f32.mxu0 0.0
    %688 = vmatmul.mubr.f32.gmra.mrb[0].mxu0 %v621
    %v689 = vpop.f32.mrb[0].mxu0
    %v690 = vadd.f32 0.0, %v689
    %v691 = vpop.f32.mrb[0].mxu0
    %692 = vdwg.mxu0
    %694 = vrot.lane.b32.xlu0 %v690, 24
    %v695 = vpop.permute.xlu0 %694
    %vm697 = vcmask 261312
    %698 = vst.msk [vmem:[#allocation2] sm:$0xff] %vm697, %v695
    %v700 = vsel %vm45, %v34, 0
    %702 = vmatprep.subr.mxu0 0.0
    %703 = vmatpush1.xpose.msra.mxu0 %v700
    %704 = vmatprep.subr.mxu0 0.0
    %705 = vmatpush1.xpose.msra.mxu0 0.0
    %706 = vmatprep.subr.mxu0 0.0
    %707 = vmatpush1.xpose.msra.mxu0 0.0
    %708 = vmatprep.subr.mxu0 0.0
    %709 = vmatpush1.xpose.msra.mxu0 0.0
    %710 = vmatprep.subr.mxu0 0.0
    %711 = vmatpush1.xpose.msra.mxu0 0.0
    %712 = vmatprep.subr.mxu0 0.0
    %713 = vmatpush1.xpose.msra.mxu0 0.0
    %714 = vmatprep.subr.mxu0 0.0
    %715 = vmatpush1.xpose.msra.mxu0 0.0
    %716 = vmatprep.subr.mxu0 0.0
    %717 = vmatpush1.xpose.msra.mxu0 0.0
    %718 = vmatprep.subr.mxu0 0.0
    %719 = vmatpush1.xpose.msra.mxu0 0.0
    %720 = vmatprep.subr.mxu0 0.0
    %721 = vmatpush1.xpose.msra.mxu0 0.0
    %722 = vmatprep.subr.mxu0 0.0
    %723 = vmatpush1.xpose.msra.mxu0 0.0
    %724 = vmatprep.subr.mxu0 0.0
    %725 = vmatpush1.xpose.msra.mxu0 0.0
    %726 = vmatprep.subr.mxu0 0.0
    %727 = vmatpush1.xpose.msra.mxu0 0.0
    %728 = vmatprep.subr.mxu0 0.0
    %729 = vmatpush1.xpose.msra.mxu0 0.0
    %730 = vmatprep.subr.mxu0 0.0
    %731 = vmatpush1.xpose.msra.mxu0 0.0
    %732 = vmatprep.subr.mxu0 0.0
    %733 = vmatpush1.xpose.msra.mxu0 0.0
    %734 = vmatprep.subr.mxu0 0.0
    %735 = vmatpush1.xpose.msra.mxu0 0.0
    %736 = vmatprep.subr.mxu0 0.0
    %737 = vmatpush1.xpose.msra.mxu0 0.0
    %738 = vmatprep.subr.mxu0 0.0
    %739 = vmatpush1.xpose.msra.mxu0 0.0
    %740 = vmatprep.subr.mxu0 0.0
    %741 = vmatpush1.xpose.msra.mxu0 0.0
    %742 = vmatprep.subr.mxu0 0.0
    %743 = vmatpush1.xpose.msra.mxu0 0.0
    %744 = vmatprep.subr.mxu0 0.0
    %745 = vmatpush1.xpose.msra.mxu0 0.0
    %746 = vmatprep.subr.mxu0 0.0
    %747 = vmatpush1.xpose.msra.mxu0 0.0
    %748 = vmatprep.subr.mxu0 0.0
    %749 = vmatpush1.xpose.msra.mxu0 0.0
    %750 = vmatprep.subr.mxu0 0.0
    %751 = vmatpush1.xpose.msra.mxu0 0.0
    %752 = vmatprep.subr.mxu0 0.0
    %753 = vmatpush1.xpose.msra.mxu0 0.0
    %754 = vmatprep.subr.mxu0 0.0
    %755 = vmatpush1.xpose.msra.mxu0 0.0
    %756 = vmatprep.subr.mxu0 0.0
    %757 = vmatpush1.xpose.msra.mxu0 0.0
    %758 = vmatprep.subr.mxu0 0.0
    %759 = vmatpush1.xpose.msra.mxu0 0.0
    %760 = vmatprep.subr.mxu0 0.0
    %761 = vmatpush1.xpose.msra.mxu0 0.0
    %762 = vmatprep.subr.mxu0 0.0
    %763 = vmatpush1.xpose.msra.mxu0 0.0
    %764 = vmatprep.subr.mxu0 0.0
    %765 = vmatpush1.xpose.msra.mxu0 0.0
    %766 = vmatprep.mubr.f32.mxu0 0.0
    %767 = vmatmul.mubr.f32.gmra.mrb[0].mxu0 %v700
    %v768 = vpop.f32.mrb[0].mxu0
    %v769 = vadd.f32 %v44, %v768
    %v770 = vpop.f32.mrb[0].mxu0
    %771 = vdwg.mxu0
    %v772 = vsel %vm45, %v769, -inf
    %773 = vmax.xlane.f32.xlu0 %v772
    %v774 = vpop.xlane.xlu0 %773
    %v775 = vsub.f32 %v769, %v774
    %v776 = vmul.f32 %v775, 1.442695
    %v777 = vpow.pop %v776
    %v778 = vsel %vm45, %v777, 0.0
    %779 = vadd.xlane.f32.xlu0 %v778
    %v780 = vpop.xlane.xlu0 %779
    %v781 = vrcp.pop %v780
    %v782 = vmul.f32 %v777, %v781
    %v784 = vsel %vm45, %v782, 0
    %786 = vmatprep.subr.mxu0 0.0
    %787 = vmatpush1.msra.mxu0 %v34
    %788 = vmatprep.subr.mxu0 0.0
    %789 = vmatpush1.msra.mxu0 0.0
    %790 = vmatprep.subr.mxu0 0.0
    %791 = vmatpush1.msra.mxu0 0.0
    %792 = vmatprep.subr.mxu0 0.0
    %793 = vmatpush1.msra.mxu0 0.0
    %794 = vmatprep.subr.mxu0 0.0
    %795 = vmatpush1.msra.mxu0 0.0
    %796 = vmatprep.subr.mxu0 0.0
    %797 = vmatpush1.msra.mxu0 0.0
    %798 = vmatprep.subr.mxu0 0.0
    %799 = vmatpush1.msra.mxu0 0.0
    %800 = vmatprep.subr.mxu0 0.0
    %801 = vmatpush1.msra.mxu0 0.0
    %802 = vmatprep.subr.mxu0 0.0
    %803 = vmatpush1.msra.mxu0 0.0
    %804 = vmatprep.subr.mxu0 0.0
    %805 = vmatpush1.msra.mxu0 0.0
    %806 = vmatprep.subr.mxu0 0.0
    %807 = vmatpush1.msra.mxu0 0.0
    %808 = vmatprep.subr.mxu0 0.0
    %809 = vmatpush1.msra.mxu0 0.0
    %810 = vmatprep.subr.mxu0 0.0
    %811 = vmatpush1.msra.mxu0 0.0
    %812 = vmatprep.subr.mxu0 0.0
    %813 = vmatpush1.msra.mxu0 0.0
    %814 = vmatprep.subr.mxu0 0.0
    %815 = vmatpush1.msra.mxu0 0.0
    %816 = vmatprep.subr.mxu0 0.0
    %817 = vmatpush1.msra.mxu0 0.0
    %818 = vmatprep.subr.mxu0 0.0
    %819 = vmatpush1.msra.mxu0 0.0
    %820 = vmatprep.subr.mxu0 0.0
    %821 = vmatpush1.msra.mxu0 0.0
    %822 = vmatprep.subr.mxu0 0.0
    %823 = vmatpush1.msra.mxu0 0.0
    %824 = vmatprep.subr.mxu0 0.0
    %825 = vmatpush1.msra.mxu0 0.0
    %826 = vmatprep.subr.mxu0 0.0
    %827 = vmatpush1.msra.mxu0 0.0
    %828 = vmatprep.subr.mxu0 0.0
    %829 = vmatpush1.msra.mxu0 0.0
    %830 = vmatprep.subr.mxu0 0.0
    %831 = vmatpush1.msra.mxu0 0.0
    %832 = vmatprep.subr.mxu0 0.0
    %833 = vmatpush1.msra.mxu0 0.0
    %834 = vmatprep.subr.mxu0 0.0
    %835 = vmatpush1.msra.mxu0 0.0
    %836 = vmatprep.subr.mxu0 0.0
    %837 = vmatpush1.msra.mxu0 0.0
    %838 = vmatprep.subr.mxu0 0.0
    %839 = vmatpush1.msra.mxu0 0.0
    %840 = vmatprep.subr.mxu0 0.0
    %841 = vmatpush1.msra.mxu0 0.0
    %842 = vmatprep.subr.mxu0 0.0
    %843 = vmatpush1.msra.mxu0 0.0
    %844 = vmatprep.subr.mxu0 0.0
    %845 = vmatpush1.msra.mxu0 0.0
    %846 = vmatprep.subr.mxu0 0.0
    %847 = vmatpush1.msra.mxu0 0.0
    %848 = vmatprep.subr.mxu0 0.0
    %849 = vmatpush1.msra.mxu0 0.0
    %850 = vmatprep.mubr.f32.mxu0 0.0
    %851 = vmatmul.mubr.f32.gmra.mrb[0].mxu0 %v784
    %v852 = vpop.f32.mrb[0].mxu0
    %v853 = vadd.f32 0.0, %v852
    %v854 = vpop.f32.mrb[0].mxu0
    %855 = vdwg.mxu0
    %856 = vst.msk [vmem:[#allocation2 + $0x8] sm:$0xff] %vm45, %v853
    %857 = vrot.lane.b32.xlu0 %v34, 120
    %v858 = vpop.permute.xlu0 %857
    %v859 = vsel %vm45, %v858, 0
    %861 = vmatprep.subr.mxu0 0.0
    %862 = vmatpush1.xpose.msra.mxu0 %v859
    %863 = vmatprep.subr.mxu0 0.0
    %864 = vmatpush1.xpose.msra.mxu0 0.0
    %865 = vmatprep.subr.mxu0 0.0
    %866 = vmatpush1.xpose.msra.mxu0 0.0
    %867 = vmatprep.subr.mxu0 0.0
    %868 = vmatpush1.xpose.msra.mxu0 0.0
    %869 = vmatprep.subr.mxu0 0.0
    %870 = vmatpush1.xpose.msra.mxu0 0.0
    %871 = vmatprep.subr.mxu0 0.0
    %872 = vmatpush1.xpose.msra.mxu0 0.0
    %873 = vmatprep.subr.mxu0 0.0
    %874 = vmatpush1.xpose.msra.mxu0 0.0
    %875 = vmatprep.subr.mxu0 0.0
    %876 = vmatpush1.xpose.msra.mxu0 0.0
    %877 = vmatprep.subr.mxu0 0.0
    %878 = vmatpush1.xpose.msra.mxu0 0.0
    %879 = vmatprep.subr.mxu0 0.0
    %880 = vmatpush1.xpose.msra.mxu0 0.0
    %881 = vmatprep.subr.mxu0 0.0
    %882 = vmatpush1.xpose.msra.mxu0 0.0
    %883 = vmatprep.subr.mxu0 0.0
    %884 = vmatpush1.xpose.msra.mxu0 0.0
    %885 = vmatprep.subr.mxu0 0.0
    %886 = vmatpush1.xpose.msra.mxu0 0.0
    %887 = vmatprep.subr.mxu0 0.0
    %888 = vmatpush1.xpose.msra.mxu0 0.0
    %889 = vmatprep.subr.mxu0 0.0
    %890 = vmatpush1.xpose.msra.mxu0 0.0
    %891 = vmatprep.subr.mxu0 0.0
    %892 = vmatpush1.xpose.msra.mxu0 0.0
    %893 = vmatprep.subr.mxu0 0.0
    %894 = vmatpush1.xpose.msra.mxu0 0.0
    %895 = vmatprep.subr.mxu0 0.0
    %896 = vmatpush1.xpose.msra.mxu0 0.0
    %897 = vmatprep.subr.mxu0 0.0
    %898 = vmatpush1.xpose.msra.mxu0 0.0
    %899 = vmatprep.subr.mxu0 0.0
    %900 = vmatpush1.xpose.msra.mxu0 0.0
    %901 = vmatprep.subr.mxu0 0.0
    %902 = vmatpush1.xpose.msra.mxu0 0.0
    %903 = vmatprep.subr.mxu0 0.0
    %904 = vmatpush1.xpose.msra.mxu0 0.0
    %905 = vmatprep.subr.mxu0 0.0
    %906 = vmatpush1.xpose.msra.mxu0 0.0
    %907 = vmatprep.subr.mxu0 0.0
    %908 = vmatpush1.xpose.msra.mxu0 0.0
    %909 = vmatprep.subr.mxu0 0.0
    %910 = vmatpush1.xpose.msra.mxu0 0.0
    %911 = vmatprep.subr.mxu0 0.0
    %912 = vmatpush1.xpose.msra.mxu0 0.0
    %913 = vmatprep.subr.mxu0 0.0
    %914 = vmatpush1.xpose.msra.mxu0 0.0
    %915 = vmatprep.subr.mxu0 0.0
    %916 = vmatpush1.xpose.msra.mxu0 0.0
    %917 = vmatprep.subr.mxu0 0.0
    %918 = vmatpush1.xpose.msra.mxu0 0.0
    %919 = vmatprep.subr.mxu0 0.0
    %920 = vmatpush1.xpose.msra.mxu0 0.0
    %921 = vmatprep.subr.mxu0 0.0
    %922 = vmatpush1.xpose.msra.mxu0 0.0
    %923 = vmatprep.subr.mxu0 0.0
    %924 = vmatpush1.xpose.msra.mxu0 0.0
    %925 = vmatprep.mubr.f32.mxu0 0.0
    %926 = vmatmul.mubr.f32.gmra.mrb[0].mxu0 %v859
    %v927 = vpop.f32.mrb[0].mxu0
    %v928 = vadd.f32 %v44, %v927
    %v929 = vpop.f32.mrb[0].mxu0
    %930 = vdwg.mxu0
    %v931 = vsel %vm45, %v928, -inf
    %932 = vmax.xlane.f32.xlu0 %v931
    %v933 = vpop.xlane.xlu0 %932
    %v934 = vsub.f32 %v928, %v933
    %v935 = vmul.f32 %v934, 1.442695
    %v936 = vpow.pop %v935
    %v937 = vsel %vm45, %v936, 0.0
    %938 = vadd.xlane.f32.xlu0 %v937
    %v939 = vpop.xlane.xlu0 %938
    %v940 = vrcp.pop %v939
    %v941 = vmul.f32 %v936, %v940
    %v944 = vsel %vm45, %v941, 0
    %946 = vmatprep.subr.mxu0 0.0
    %947 = vmatpush1.msra.mxu0 %v858
    %948 = vmatprep.subr.mxu0 0.0
    %949 = vmatpush1.msra.mxu0 0.0
    %950 = vmatprep.subr.mxu0 0.0
    %951 = vmatpush1.msra.mxu0 0.0
    %952 = vmatprep.subr.mxu0 0.0
    %953 = vmatpush1.msra.mxu0 0.0
    %954 = vmatprep.subr.mxu0 0.0
    %955 = vmatpush1.msra.mxu0 0.0
    %956 = vmatprep.subr.mxu0 0.0
    %957 = vmatpush1.msra.mxu0 0.0
    %958 = vmatprep.subr.mxu0 0.0
    %959 = vmatpush1.msra.mxu0 0.0
    %960 = vmatprep.subr.mxu0 0.0
    %961 = vmatpush1.msra.mxu0 0.0
    %962 = vmatprep.subr.mxu0 0.0
    %963 = vmatpush1.msra.mxu0 0.0
    %964 = vmatprep.subr.mxu0 0.0
    %965 = vmatpush1.msra.mxu0 0.0
    %966 = vmatprep.subr.mxu0 0.0
    %967 = vmatpush1.msra.mxu0 0.0
    %968 = vmatprep.subr.mxu0 0.0
    %969 = vmatpush1.msra.mxu0 0.0
    %970 = vmatprep.subr.mxu0 0.0
    %971 = vmatpush1.msra.mxu0 0.0
    %972 = vmatprep.subr.mxu0 0.0
    %973 = vmatpush1.msra.mxu0 0.0
    %974 = vmatprep.subr.mxu0 0.0
    %975 = vmatpush1.msra.mxu0 0.0
    %976 = vmatprep.subr.mxu0 0.0
    %977 = vmatpush1.msra.mxu0 0.0
    %978 = vmatprep.subr.mxu0 0.0
    %979 = vmatpush1.msra.mxu0 0.0
    %980 = vmatprep.subr.mxu0 0.0
    %981 = vmatpush1.msra.mxu0 0.0
    %982 = vmatprep.subr.mxu0 0.0
    %983 = vmatpush1.msra.mxu0 0.0
    %984 = vmatprep.subr.mxu0 0.0
    %985 = vmatpush1.msra.mxu0 0.0
    %986 = vmatprep.subr.mxu0 0.0
    %987 = vmatpush1.msra.mxu0 0.0
    %988 = vmatprep.subr.mxu0 0.0
    %989 = vmatpush1.msra.mxu0 0.0
    %990 = vmatprep.subr.mxu0 0.0
    %991 = vmatpush1.msra.mxu0 0.0
    %992 = vmatprep.subr.mxu0 0.0
    %993 = vmatpush1.msra.mxu0 0.0
    %994 = vmatprep.subr.mxu0 0.0
    %995 = vmatpush1.msra.mxu0 0.0
    %996 = vmatprep.subr.mxu0 0.0
    %997 = vmatpush1.msra.mxu0 0.0
    %998 = vmatprep.subr.mxu0 0.0
    %999 = vmatpush1.msra.mxu0 0.0
    %1000 = vmatprep.subr.mxu0 0.0
    %1001 = vmatpush1.msra.mxu0 0.0
    %1002 = vmatprep.subr.mxu0 0.0
    %1003 = vmatpush1.msra.mxu0 0.0
    %1004 = vmatprep.subr.mxu0 0.0
    %1005 = vmatpush1.msra.mxu0 0.0
    %1006 = vmatprep.subr.mxu0 0.0
    %1007 = vmatpush1.msra.mxu0 0.0
    %1008 = vmatprep.subr.mxu0 0.0
    %1009 = vmatpush1.msra.mxu0 0.0
    %1010 = vmatprep.mubr.f32.mxu0 0.0
    %1011 = vmatmul.mubr.f32.gmra.mrb[0].mxu0 %v944
    %v1012 = vpop.f32.mrb[0].mxu0
    %v1013 = vadd.f32 0.0, %v1012
    %v1014 = vpop.f32.mrb[0].mxu0
    %1015 = vdwg.mxu0
    %1017 = vrot.lane.b32.xlu0 %v1013, 8
    %v1018 = vpop.permute.xlu0 %1017
    %1020 = vst.msk [vmem:[#allocation2 + $0x8] sm:$0xff] %vm367, %v1018
    %1021 = vrot.lane.b32.xlu0 %v34, 112
    %v1022 = vpop.permute.xlu0 %1021
    %v1023 = vsel %vm45, %v1022, 0
    %1025 = vmatprep.subr.mxu0 0.0
    %1026 = vmatpush1.xpose.msra.mxu0 %v1023
    %1027 = vmatprep.subr.mxu0 0.0
    %1028 = vmatpush1.xpose.msra.mxu0 0.0
    %1029 = vmatprep.subr.mxu0 0.0
    %1030 = vmatpush1.xpose.msra.mxu0 0.0
    %1031 = vmatprep.subr.mxu0 0.0
    %1032 = vmatpush1.xpose.msra.mxu0 0.0
    %1033 = vmatprep.subr.mxu0 0.0
    %1034 = vmatpush1.xpose.msra.mxu0 0.0
    %1035 = vmatprep.subr.mxu0 0.0
    %1036 = vmatpush1.xpose.msra.mxu0 0.0
    %1037 = vmatprep.subr.mxu0 0.0
    %1038 = vmatpush1.xpose.msra.mxu0 0.0
    %1039 = vmatprep.subr.mxu0 0.0
    %1040 = vmatpush1.xpose.msra.mxu0 0.0
    %1041 = vmatprep.subr.mxu0 0.0
    %1042 = vmatpush1.xpose.msra.mxu0 0.0
    %1043 = vmatprep.subr.mxu0 0.0
    %1044 = vmatpush1.xpose.msra.mxu0 0.0
    %1045 = vmatprep.subr.mxu0 0.0
    %1046 = vmatpush1.xpose.msra.mxu0 0.0
    %1047 = vmatprep.subr.mxu0 0.0
    %1048 = vmatpush1.xpose.msra.mxu0 0.0
    %1049 = vmatprep.subr.mxu0 0.0
    %1050 = vmatpush1.xpose.msra.mxu0 0.0
    %1051 = vmatprep.subr.mxu0 0.0
    %1052 = vmatpush1.xpose.msra.mxu0 0.0
    %1053 = vmatprep.subr.mxu0 0.0
    %1054 = vmatpush1.xpose.msra.mxu0 0.0
    %1055 = vmatprep.subr.mxu0 0.0
    %1056 = vmatpush1.xpose.msra.mxu0 0.0
    %1057 = vmatprep.subr.mxu0 0.0
    %1058 = vmatpush1.xpose.msra.mxu0 0.0
    %1059 = vmatprep.subr.mxu0 0.0
    %1060 = vmatpush1.xpose.msra.mxu0 0.0
    %1061 = vmatprep.subr.mxu0 0.0
    %1062 = vmatpush1.xpose.msra.mxu0 0.0
    %1063 = vmatprep.subr.mxu0 0.0
    %1064 = vmatpush1.xpose.msra.mxu0 0.0
    %1065 = vmatprep.subr.mxu0 0.0
    %1066 = vmatpush1.xpose.msra.mxu0 0.0
    %1067 = vmatprep.subr.mxu0 0.0
    %1068 = vmatpush1.xpose.msra.mxu0 0.0
    %1069 = vmatprep.subr.mxu0 0.0
    %1070 = vmatpush1.xpose.msra.mxu0 0.0
    %1071 = vmatprep.subr.mxu0 0.0
    %1072 = vmatpush1.xpose.msra.mxu0 0.0
    %1073 = vmatprep.subr.mxu0 0.0
    %1074 = vmatpush1.xpose.msra.mxu0 0.0
    %1075 = vmatprep.subr.mxu0 0.0
    %1076 = vmatpush1.xpose.msra.mxu0 0.0
    %1077 = vmatprep.subr.mxu0 0.0
    %1078 = vmatpush1.xpose.msra.mxu0 0.0
    %1079 = vmatprep.subr.mxu0 0.0
    %1080 = vmatpush1.xpose.msra.mxu0 0.0
    %1081 = vmatprep.subr.mxu0 0.0
    %1082 = vmatpush1.xpose.msra.mxu0 0.0
    %1083 = vmatprep.subr.mxu0 0.0
    %1084 = vmatpush1.xpose.msra.mxu0 0.0
    %1085 = vmatprep.subr.mxu0 0.0
    %1086 = vmatpush1.xpose.msra.mxu0 0.0
    %1087 = vmatprep.subr.mxu0 0.0
    %1088 = vmatpush1.xpose.msra.mxu0 0.0
    %1089 = vmatprep.mubr.f32.mxu0 0.0
    %1090 = vmatmul.mubr.f32.gmra.mrb[0].mxu0 %v1023
    %v1091 = vpop.f32.mrb[0].mxu0
    %v1092 = vadd.f32 %v44, %v1091
    %v1093 = vpop.f32.mrb[0].mxu0
    %1094 = vdwg.mxu0
    %v1095 = vsel %vm45, %v1092, -inf
    %1096 = vmax.xlane.f32.xlu0 %v1095
    %v1097 = vpop.xlane.xlu0 %1096
    %v1098 = vsub.f32 %v1092, %v1097
    %v1099 = vmul.f32 %v1098, 1.442695
    %v1100 = vpow.pop %v1099
    %v1101 = vsel %vm45, %v1100, 0.0
    %1102 = vadd.xlane.f32.xlu0 %v1101
    %v1103 = vpop.xlane.xlu0 %1102
    %v1104 = vrcp.pop %v1103
    %v1105 = vmul.f32 %v1100, %v1104
    %v1108 = vsel %vm45, %v1105, 0
    %1110 = vmatprep.subr.mxu0 0.0
    %1111 = vmatpush1.msra.mxu0 %v1022
    %1112 = vmatprep.subr.mxu0 0.0
    %1113 = vmatpush1.msra.mxu0 0.0
    %1114 = vmatprep.subr.mxu0 0.0
    %1115 = vmatpush1.msra.mxu0 0.0
    %1116 = vmatprep.subr.mxu0 0.0
    %1117 = vmatpush1.msra.mxu0 0.0
    %1118 = vmatprep.subr.mxu0 0.0
    %1119 = vmatpush1.msra.mxu0 0.0
    %1120 = vmatprep.subr.mxu0 0.0
    %1121 = vmatpush1.msra.mxu0 0.0
    %1122 = vmatprep.subr.mxu0 0.0
    %1123 = vmatpush1.msra.mxu0 0.0
    %1124 = vmatprep.subr.mxu0 0.0
    %1125 = vmatpush1.msra.mxu0 0.0
    %1126 = vmatprep.subr.mxu0 0.0
    %1127 = vmatpush1.msra.mxu0 0.0
    %1128 = vmatprep.subr.mxu0 0.0
    %1129 = vmatpush1.msra.mxu0 0.0
    %1130 = vmatprep.subr.mxu0 0.0
    %1131 = vmatpush1.msra.mxu0 0.0
    %1132 = vmatprep.subr.mxu0 0.0
    %1133 = vmatpush1.msra.mxu0 0.0
    %1134 = vmatprep.subr.mxu0 0.0
    %1135 = vmatpush1.msra.mxu0 0.0
    %1136 = vmatprep.subr.mxu0 0.0
    %1137 = vmatpush1.msra.mxu0 0.0
    %1138 = vmatprep.subr.mxu0 0.0
    %1139 = vmatpush1.msra.mxu0 0.0
    %1140 = vmatprep.subr.mxu0 0.0
    %1141 = vmatpush1.msra.mxu0 0.0
    %1142 = vmatprep.subr.mxu0 0.0
    %1143 = vmatpush1.msra.mxu0 0.0
    %1144 = vmatprep.subr.mxu0 0.0
    %1145 = vmatpush1.msra.mxu0 0.0
    %1146 = vmatprep.subr.mxu0 0.0
    %1147 = vmatpush1.msra.mxu0 0.0
    %1148 = vmatprep.subr.mxu0 0.0
    %1149 = vmatpush1.msra.mxu0 0.0
    %1150 = vmatprep.subr.mxu0 0.0
    %1151 = vmatpush1.msra.mxu0 0.0
    %1152 = vmatprep.subr.mxu0 0.0
    %1153 = vmatpush1.msra.mxu0 0.0
    %1154 = vmatprep.subr.mxu0 0.0
    %1155 = vmatpush1.msra.mxu0 0.0
    %1156 = vmatprep.subr.mxu0 0.0
    %1157 = vmatpush1.msra.mxu0 0.0
    %1158 = vmatprep.subr.mxu0 0.0
    %1159 = vmatpush1.msra.mxu0 0.0
    %1160 = vmatprep.subr.mxu0 0.0
    %1161 = vmatpush1.msra.mxu0 0.0
    %1162 = vmatprep.subr.mxu0 0.0
    %1163 = vmatpush1.msra.mxu0 0.0
    %1164 = vmatprep.subr.mxu0 0.0
    %1165 = vmatpush1.msra.mxu0 0.0
    %1166 = vmatprep.subr.mxu0 0.0
    %1167 = vmatpush1.msra.mxu0 0.0
    %1168 = vmatprep.subr.mxu0 0.0
    %1169 = vmatpush1.msra.mxu0 0.0
    %1170 = vmatprep.subr.mxu0 0.0
    %1171 = vmatpush1.msra.mxu0 0.0
    %1172 = vmatprep.subr.mxu0 0.0
    %1173 = vmatpush1.msra.mxu0 0.0
    %1174 = vmatprep.mubr.f32.mxu0 0.0
    %1175 = vmatmul.mubr.f32.gmra.mrb[0].mxu0 %v1108
    %v1176 = vpop.f32.mrb[0].mxu0
    %v1177 = vadd.f32 0.0, %v1176
    %v1178 = vpop.f32.mrb[0].mxu0
    %1179 = vdwg.mxu0
    %1181 = vrot.lane.b32.xlu0 %v1177, 16
    %v1182 = vpop.permute.xlu0 %1181
    %1184 = vst.msk [vmem:[#allocation2 + $0x8] sm:$0xff] %vm532, %v1182
    %1185 = vrot.lane.b32.xlu0 %v34, 104
    %v1186 = vpop.permute.xlu0 %1185
    %v1187 = vsel %vm45, %v1186, 0
    %1189 = vmatprep.subr.mxu0 0.0
    %1190 = vmatpush1.xpose.msra.mxu0 %v1187
    %1191 = vmatprep.subr.mxu0 0.0
    %1192 = vmatpush1.xpose.msra.mxu0 0.0
    %1193 = vmatprep.subr.mxu0 0.0
    %1194 = vmatpush1.xpose.msra.mxu0 0.0
    %1195 = vmatprep.subr.mxu0 0.0
    %1196 = vmatpush1.xpose.msra.mxu0 0.0
    %1197 = vmatprep.subr.mxu0 0.0
    %1198 = vmatpush1.xpose.msra.mxu0 0.0
    %1199 = vmatprep.subr.mxu0 0.0
    %1200 = vmatpush1.xpose.msra.mxu0 0.0
    %1201 = vmatprep.subr.mxu0 0.0
    %1202 = vmatpush1.xpose.msra.mxu0 0.0
    %1203 = vmatprep.subr.mxu0 0.0
    %1204 = vmatpush1.xpose.msra.mxu0 0.0
    %1205 = vmatprep.subr.mxu0 0.0
    %1206 = vmatpush1.xpose.msra.mxu0 0.0
    %1207 = vmatprep.subr.mxu0 0.0
    %1208 = vmatpush1.xpose.msra.mxu0 0.0
    %1209 = vmatprep.subr.mxu0 0.0
    %1210 = vmatpush1.xpose.msra.mxu0 0.0
    %1211 = vmatprep.subr.mxu0 0.0
    %1212 = vmatpush1.xpose.msra.mxu0 0.0
    %1213 = vmatprep.subr.mxu0 0.0
    %1214 = vmatpush1.xpose.msra.mxu0 0.0
    %1215 = vmatprep.subr.mxu0 0.0
    %1216 = vmatpush1.xpose.msra.mxu0 0.0
    %1217 = vmatprep.subr.mxu0 0.0
    %1218 = vmatpush1.xpose.msra.mxu0 0.0
    %1219 = vmatprep.subr.mxu0 0.0
    %1220 = vmatpush1.xpose.msra.mxu0 0.0
    %1221 = vmatprep.subr.mxu0 0.0
    %1222 = vmatpush1.xpose.msra.mxu0 0.0
    %1223 = vmatprep.subr.mxu0 0.0
    %1224 = vmatpush1.xpose.msra.mxu0 0.0
    %1225 = vmatprep.subr.mxu0 0.0
    %1226 = vmatpush1.xpose.msra.mxu0 0.0
    %1227 = vmatprep.subr.mxu0 0.0
    %1228 = vmatpush1.xpose.msra.mxu0 0.0
    %1229 = vmatprep.subr.mxu0 0.0
    %1230 = vmatpush1.xpose.msra.mxu0 0.0
    %1231 = vmatprep.subr.mxu0 0.0
    %1232 = vmatpush1.xpose.msra.mxu0 0.0
    %1233 = vmatprep.subr.mxu0 0.0
    %1234 = vmatpush1.xpose.msra.mxu0 0.0
    %1235 = vmatprep.subr.mxu0 0.0
    %1236 = vmatpush1.xpose.msra.mxu0 0.0
    %1237 = vmatprep.subr.mxu0 0.0
    %1238 = vmatpush1.xpose.msra.mxu0 0.0
    %1239 = vmatprep.subr.mxu0 0.0
    %1240 = vmatpush1.xpose.msra.mxu0 0.0
    %1241 = vmatprep.subr.mxu0 0.0
    %1242 = vmatpush1.xpose.msra.mxu0 0.0
    %1243 = vmatprep.subr.mxu0 0.0
    %1244 = vmatpush1.xpose.msra.mxu0 0.0
    %1245 = vmatprep.subr.mxu0 0.0
    %1246 = vmatpush1.xpose.msra.mxu0 0.0
    %1247 = vmatprep.subr.mxu0 0.0
    %1248 = vmatpush1.xpose.msra.mxu0 0.0
    %1249 = vmatprep.subr.mxu0 0.0
    %1250 = vmatpush1.xpose.msra.mxu0 0.0
    %1251 = vmatprep.subr.mxu0 0.0
    %1252 = vmatpush1.xpose.msra.mxu0 0.0
    %1253 = vmatprep.mubr.f32.mxu0 0.0
    %1254 = vmatmul.mubr.f32.gmra.mrb[0].mxu0 %v1187
    %v1255 = vpop.f32.mrb[0].mxu0
    %v1256 = vadd.f32 %v44, %v1255
    %v1257 = vpop.f32.mrb[0].mxu0
    %1258 = vdwg.mxu0
    %v1259 = vsel %vm45, %v1256, -inf
    %1260 = vmax.xlane.f32.xlu0 %v1259
    %v1261 = vpop.xlane.xlu0 %1260
    %v1262 = vsub.f32 %v1256, %v1261
    %v1263 = vmul.f32 %v1262, 1.442695
    %v1264 = vpow.pop %v1263
    %v1265 = vsel %vm45, %v1264, 0.0
    %1266 = vadd.xlane.f32.xlu0 %v1265
    %v1267 = vpop.xlane.xlu0 %1266
    %v1268 = vrcp.pop %v1267
    %v1269 = vmul.f32 %v1264, %v1268
    %v1272 = vsel %vm45, %v1269, 0
    %1274 = vmatprep.subr.mxu0 0.0
    %1275 = vmatpush1.msra.mxu0 %v1186
    %1276 = vmatprep.subr.mxu0 0.0
    %1277 = vmatpush1.msra.mxu0 0.0
    %1278 = vmatprep.subr.mxu0 0.0
    %1279 = vmatpush1.msra.mxu0 0.0
    %1280 = vmatprep.subr.mxu0 0.0
    %1281 = vmatpush1.msra.mxu0 0.0
    %1282 = vmatprep.subr.mxu0 0.0
    %1283 = vmatpush1.msra.mxu0 0.0
    %1284 = vmatprep.subr.mxu0 0.0
    %1285 = vmatpush1.msra.mxu0 0.0
    %1286 = vmatprep.subr.mxu0 0.0
    %1287 = vmatpush1.msra.mxu0 0.0
    %1288 = vmatprep.subr.mxu0 0.0
    %1289 = vmatpush1.msra.mxu0 0.0
    %1290 = vmatprep.subr.mxu0 0.0
    %1291 = vmatpush1.msra.mxu0 0.0
    %1292 = vmatprep.subr.mxu0 0.0
    %1293 = vmatpush1.msra.mxu0 0.0
    %1294 = vmatprep.subr.mxu0 0.0
    %1295 = vmatpush1.msra.mxu0 0.0
    %1296 = vmatprep.subr.mxu0 0.0
    %1297 = vmatpush1.msra.mxu0 0.0
    %1298 = vmatprep.subr.mxu0 0.0
    %1299 = vmatpush1.msra.mxu0 0.0
    %1300 = vmatprep.subr.mxu0 0.0
    %1301 = vmatpush1.msra.mxu0 0.0
    %1302 = vmatprep.subr.mxu0 0.0
    %1303 = vmatpush1.msra.mxu0 0.0
    %1304 = vmatprep.subr.mxu0 0.0
    %1305 = vmatpush1.msra.mxu0 0.0
    %1306 = vmatprep.subr.mxu0 0.0
    %1307 = vmatpush1.msra.mxu0 0.0
    %1308 = vmatprep.subr.mxu0 0.0
    %1309 = vmatpush1.msra.mxu0 0.0
    %1310 = vmatprep.subr.mxu0 0.0
    %1311 = vmatpush1.msra.mxu0 0.0
    %1312 = vmatprep.subr.mxu0 0.0
    %1313 = vmatpush1.msra.mxu0 0.0
    %1314 = vmatprep.subr.mxu0 0.0
    %1315 = vmatpush1.msra.mxu0 0.0
    %1316 = vmatprep.subr.mxu0 0.0
    %1317 = vmatpush1.msra.mxu0 0.0
    %1318 = vmatprep.subr.mxu0 0.0
    %1319 = vmatpush1.msra.mxu0 0.0
    %1320 = vmatprep.subr.mxu0 0.0
    %1321 = vmatpush1.msra.mxu0 0.0
    %1322 = vmatprep.subr.mxu0 0.0
    %1323 = vmatpush1.msra.mxu0 0.0
    %1324 = vmatprep.subr.mxu0 0.0
    %1325 = vmatpush1.msra.mxu0 0.0
    %1326 = vmatprep.subr.mxu0 0.0
    %1327 = vmatpush1.msra.mxu0 0.0
    %1328 = vmatprep.subr.mxu0 0.0
    %1329 = vmatpush1.msra.mxu0 0.0
    %1330 = vmatprep.subr.mxu0 0.0
    %1331 = vmatpush1.msra.mxu0 0.0
    %1332 = vmatprep.subr.mxu0 0.0
    %1333 = vmatpush1.msra.mxu0 0.0
    %1334 = vmatprep.subr.mxu0 0.0
    %1335 = vmatpush1.msra.mxu0 0.0
    %1336 = vmatprep.subr.mxu0 0.0
    %1337 = vmatpush1.msra.mxu0 0.0
    %1338 = vmatprep.mubr.f32.mxu0 0.0
    %1339 = vmatmul.mubr.f32.gmra.mrb[0].mxu0 %v1272
    %v1340 = vpop.f32.mrb[0].mxu0
    %v1341 = vadd.f32 0.0, %v1340
    %v1342 = vpop.f32.mrb[0].mxu0
    %1343 = vdwg.mxu0
    %1345 = vrot.lane.b32.xlu0 %v1341, 24
    %v1346 = vpop.permute.xlu0 %1345
    %1348 = vst.msk [vmem:[#allocation2 + $0x8] sm:$0xff] %vm697, %v1346
    %v1349 = vld [vmem:[#allocation2] sm:$0xff]
    %v1350 = vld [vmem:[#allocation2 + $0x8] sm:$0xff]
    %v1351 = vadd.f32 %v33, %v1349
    %v1352 = vadd.f32 %v34, %v1350
    %v1353 = vld [vmem:[%s1] sm:$0x1]
    %v1354 = vld [vmem:[%s2] sm:$0x1]
    %vm1355 = vcmask 261120
    %v1356 = vsel %vm1355, %v1351, 0.0
    %1357 = vadd.xlane.f32.xlu0 %v1356
    %v1358 = vpop.xlane.xlu0 %1357
    %v1359 = vsel %vm1355, %v1352, 0.0
    %1360 = vadd.xlane.f32.xlu0 %v1359
    %v1361 = vpop.xlane.xlu0 %1360
    %v1362 = vrcp.pop 32.0
    %v1363 = vmul.f32 %v1358, %v1362
    %v1364 = vmul.f32 %v1361, %v1362
    %v1365 = vsub.f32 %v1351, %v1363
    %v1366 = vsub.f32 %v1352, %v1364
    %v1367 = vmul.f32 %v1365, %v1365
    %v1368 = vmul.f32 %v1366, %v1366
    %v1369 = vsel %vm1355, %v1367, 0.0
    %1370 = vadd.xlane.f32.xlu0 %v1369
    %v1371 = vpop.xlane.xlu0 %1370
    %v1372 = vsel %vm1355, %v1368, 0.0
    %1373 = vadd.xlane.f32.xlu0 %v1372
    %v1374 = vpop.xlane.xlu0 %1373
    %v1375 = vmul.f32 %v1371, %v1362
    %v1376 = vmul.f32 %v1374, %v1362
    %v1377 = vadd.f32 %v1375, 1e-05
    %v1378 = vadd.f32 %v1376, 1e-05
    %v1379 = vrsqrt.pop %v1377
    %v1380 = vrsqrt.pop %v1378
    %v1381 = vmul.f32 %v1365, %v1379
    %v1382 = vmul.f32 %v1366, %v1380
    %v1384 = vlaneseq
    %v1385 = vshrl.u32 %v1384, 7
    %v1386 = vsub.s32 0, %v1385
    %v1387 = vrot.slane %v1353, %v1386
    %v1389 = vmul.f32 %v1381, %v1387
    %v1390 = vmul.f32 %v1382, %v1387
    %v1392 = vlaneseq
    %v1393 = vshrl.u32 %v1392, 7
    %v1394 = vsub.s32 0, %v1393
    %v1395 = vrot.slane %v1354, %v1394
    %v1397 = vadd.f32 %v1389, %v1395
    %v1398 = vadd.f32 %v1390, %v1395
    %v1399 = vld [vmem:[%s5] sm:$0xff]
    %v1400 = vld [vmem:[%s5 + $0x8] sm:$0xff]
    %v1401 = vld [vmem:[%s5 + $0x10] sm:$0xff]
    %v1402 = vld [vmem:[%s5 + $0x18] sm:$0xff]
    %v1403 = vld [vmem:[%s6] sm:$0x1]
    %v1405 = vlaneseq
    %v1406 = vshrl.u32 %v1405, 7
    %v1407 = vsub.s32 0, %v1406
    %v1408 = vrot.slane %v1403, %v1407
    %v1411 = vsel %vm1355, %v1397, 0
    %v1414 = vsel %vm1355, %v1398, 0
    %1416 = vmatprep.subr.mxu0 0.0
    %1417 = vmatpush1.msra.mxu0 %v1399
    %1418 = vmatprep.subr.mxu0 0.0
    %1419 = vmatpush1.msra.mxu0 %v1400
    %1420 = vmatprep.subr.mxu0 0.0
    %1421 = vmatpush1.msra.mxu0 %v1401
    %1422 = vmatprep.subr.mxu0 0.0
    %1423 = vmatpush1.msra.mxu0 %v1402
    %1424 = vmatprep.subr.mxu0 0.0
    %1425 = vmatpush1.msra.mxu0 0.0
    %1426 = vmatprep.subr.mxu0 0.0
    %1427 = vmatpush1.msra.mxu0 0.0
    %1428 = vmatprep.subr.mxu0 0.0
    %1429 = vmatpush1.msra.mxu0 0.0
    %1430 = vmatprep.subr.mxu0 0.0
    %1431 = vmatpush1.msra.mxu0 0.0
    %1432 = vmatprep.subr.mxu0 0.0
    %1433 = vmatpush1.msra.mxu0 0.0
    %1434 = vmatprep.subr.mxu0 0.0
    %1435 = vmatpush1.msra.mxu0 0.0
    %1436 = vmatprep.subr.mxu0 0.0
    %1437 = vmatpush1.msra.mxu0 0.0
    %1438 = vmatprep.subr.mxu0 0.0
    %1439 = vmatpush1.msra.mxu0 0.0
    %1440 = vmatprep.subr.mxu0 0.0
    %1441 = vmatpush1.msra.mxu0 0.0
    %1442 = vmatprep.subr.mxu0 0.0
    %1443 = vmatpush1.msra.mxu0 0.0
    %1444 = vmatprep.subr.mxu0 0.0
    %1445 = vmatpush1.msra.mxu0 0.0
    %1446 = vmatprep.subr.mxu0 0.0
    %1447 = vmatpush1.msra.mxu0 0.0
    %1448 = vmatprep.subr.mxu0 0.0
    %1449 = vmatpush1.msra.mxu0 0.0
    %1450 = vmatprep.subr.mxu0 0.0
    %1451 = vmatpush1.msra.mxu0 0.0
    %1452 = vmatprep.subr.mxu0 0.0
    %1453 = vmatpush1.msra.mxu0 0.0
    %1454 = vmatprep.subr.mxu0 0.0
    %1455 = vmatpush1.msra.mxu0 0.0
    %1456 = vmatprep.subr.mxu0 0.0
    %1457 = vmatpush1.msra.mxu0 0.0
    %1458 = vmatprep.subr.mxu0 0.0
    %1459 = vmatpush1.msra.mxu0 0.0
    %1460 = vmatprep.subr.mxu0 0.0
    %1461 = vmatpush1.msra.mxu0 0.0
    %1462 = vmatprep.subr.mxu0 0.0
    %1463 = vmatpush1.msra.mxu0 0.0
    %1464 = vmatprep.subr.mxu0 0.0
    %1465 = vmatpush1.msra.mxu0 0.0
    %1466 = vmatprep.subr.mxu0 0.0
    %1467 = vmatpush1.msra.mxu0 0.0
    %1468 = vmatprep.subr.mxu0 0.0
    %1469 = vmatpush1.msra.mxu0 0.0
    %1470 = vmatprep.subr.mxu0 0.0
    %1471 = vmatpush1.msra.mxu0 0.0
    %1472 = vmatprep.subr.mxu0 0.0
    %1473 = vmatpush1.msra.mxu0 0.0
    %1474 = vmatprep.subr.mxu0 0.0
    %1475 = vmatpush1.msra.mxu0 0.0
    %1476 = vmatprep.subr.mxu0 0.0
    %1477 = vmatpush1.msra.mxu0 0.0
    %1478 = vmatprep.subr.mxu0 0.0
    %1479 = vmatpush1.msra.mxu0 0.0
    %1480 = vmatprep.mubr.f32.mxu0 0.0
    %1481 = vmatmul.mubr.f32.gmra.mrb[0].mxu0 %v1411
    %v1482 = vpop.f32.mrb[0].mxu0
    %v1483 = vadd.f32 %v1408, %v1482
    %v1484 = vpop.f32.mrb[0].mxu0
    %1485 = vmatprep.mubr.f32.mxu0 0.0
    %1486 = vmatmul.mubr.f32.gmra.mrb[0].mxu0 %v1414
    %v1487 = vpop.f32.mrb[0].mxu0
    %v1488 = vadd.f32 %v1408, %v1487
    %v1489 = vpop.f32.mrb[0].mxu0
    %1490 = vdwg.mxu0
    %v1491 = vmax.f32 %v1483, 0.0
    %v1492 = vmax.f32 %v1488, 0.0
    %v1493 = vld [vmem:[%s7] sm:$0xff]
    %v1494 = vld [vmem:[%s7 + $0x8] sm:$0xff]
    %v1495 = vld [vmem:[%s7 + $0x10] sm:$0xff]
    %v1496 = vld [vmem:[%s7 + $0x18] sm:$0xff]
    %v1497 = vld [vmem:[%s7 + $0x20] sm:$0xff]
    %v1498 = vld [vmem:[%s7 + $0x28] sm:$0xff]
    %v1499 = vld [vmem:[%s7 + $0x30] sm:$0xff]
    %v1500 = vld [vmem:[%s7 + $0x38] sm:$0xff]
    %v1501 = vld [vmem:[%s8] sm:$0x1]
    %v1503 = vlaneseq
    %v1504 = vshrl.u32 %v1503, 7
    %v1505 = vsub.s32 0, %v1504
    %v1506 = vrot.slane %v1501, %v1505
    %vm1508 = vcmask 523264
    %v1510 = vsel %vm1508, %v1491, 0
    %v1513 = vsel %vm1508, %v1492, 0
    %1515 = vmatprep.subr.mxu0 0.0
    %1516 = vmatpush1.msra.mxu0 %v1493
    %1517 = vmatprep.subr.mxu0 0.0
    %1518 = vmatpush1.msra.mxu0 %v1494
    %1519 = vmatprep.subr.mxu0 0.0
    %1520 = vmatpush1.msra.mxu0 %v1495
    %1521 = vmatprep.subr.mxu0 0.0
    %1522 = vmatpush1.msra.mxu0 %v1496
    %1523 = vmatprep.subr.mxu0 0.0
    %1524 = vmatpush1.msra.mxu0 %v1497
    %1525 = vmatprep.subr.mxu0 0.0
    %1526 = vmatpush1.msra.mxu0 %v1498
    %1527 = vmatprep.subr.mxu0 0.0
    %1528 = vmatpush1.msra.mxu0 %v1499
    %1529 = vmatprep.subr.mxu0 0.0
    %1530 = vmatpush1.msra.mxu0 %v1500
    %1531 = vmatprep.subr.mxu0 0.0
    %1532 = vmatpush1.msra.mxu0 0.0
    %1533 = vmatprep.subr.mxu0 0.0
    %1534 = vmatpush1.msra.mxu0 0.0
    %1535 = vmatprep.subr.mxu0 0.0
    %1536 = vmatpush1.msra.mxu0 0.0
    %1537 = vmatprep.subr.mxu0 0.0
    %1538 = vmatpush1.msra.mxu0 0.0
    %1539 = vmatprep.subr.mxu0 0.0
    %1540 = vmatpush1.msra.mxu0 0.0
    %1541 = vmatprep.subr.mxu0 0.0
    %1542 = vmatpush1.msra.mxu0 0.0
    %1543 = vmatprep.subr.mxu0 0.0
    %1544 = vmatpush1.msra.mxu0 0.0
    %1545 = vmatprep.subr.mxu0 0.0
    %1546 = vmatpush1.msra.mxu0 0.0
    %1547 = vmatprep.subr.mxu0 0.0
    %1548 = vmatpush1.msra.mxu0 0.0
    %1549 = vmatprep.subr.mxu0 0.0
    %1550 = vmatpush1.msra.mxu0 0.0
    %1551 = vmatprep.subr.mxu0 0.0
    %1552 = vmatpush1.msra.mxu0 0.0
    %1553 = vmatprep.subr.mxu0 0.0
    %1554 = vmatpush1.msra.mxu0 0.0
    %1555 = vmatprep.subr.mxu0 0.0
    %1556 = vmatpush1.msra.mxu0 0.0
    %1557 = vmatprep.subr.mxu0 0.0
    %1558 = vmatpush1.msra.mxu0 0.0
    %1559 = vmatprep.subr.mxu0 0.0
    %1560 = vmatpush1.msra.mxu0 0.0
    %1561 = vmatprep.subr.mxu0 0.0
    %1562 = vmatpush1.msra.mxu0 0.0
    %1563 = vmatprep.subr.mxu0 0.0
    %1564 = vmatpush1.msra.mxu0 0.0
    %1565 = vmatprep.subr.mxu0 0.0
    %1566 = vmatpush1.msra.mxu0 0.0
    %1567 = vmatprep.subr.mxu0 0.0
    %1568 = vmatpush1.msra.mxu0 0.0
    %1569 = vmatprep.subr.mxu0 0.0
    %1570 = vmatpush1.msra.mxu0 0.0
    %1571 = vmatprep.subr.mxu0 0.0
    %1572 = vmatpush1.msra.mxu0 0.0
    %1573 = vmatprep.subr.mxu0 0.0
    %1574 = vmatpush1.msra.mxu0 0.0
    %1575 = vmatprep.subr.mxu0 0.0
    %1576 = vmatpush1.msra.mxu0 0.0
    %1577 = vmatprep.subr.mxu0 0.0
    %1578 = vmatpush1.msra.mxu0 0.0
    %1579 = vmatprep.mubr.f32.mxu0 0.0
    %1580 = vmatmul.mubr.f32.gmra.mrb[0].mxu0 %v1510
    %v1581 = vpop.f32.mrb[0].mxu0
    %v1582 = vadd.f32 %v1506, %v1581
    %v1583 = vpop.f32.mrb[0].mxu0
    %1584 = vmatprep.mubr.f32.mxu0 0.0
    %1585 = vmatmul.mubr.f32.gmra.mrb[0].mxu0 %v1513
    %v1586 = vpop.f32.mrb[0].mxu0
    %v1587 = vadd.f32 %v1506, %v1586
    %v1588 = vpop.f32.mrb[0].mxu0
    %1589 = vdwg.mxu0
    %v1590 = vadd.f32 %v1397, %v1582
    %v1591 = vadd.f32 %v1398, %v1587
    %v1592 = vld [vmem:[%s3] sm:$0x1]
    %v1593 = vld [vmem:[%s4] sm:$0x1]
    %v1594 = vsel %vm1355, %v1590, 0.0
    %1595 = vadd.xlane.f32.xlu0 %v1594
    %v1596 = vpop.xlane.xlu0 %1595
    %v1597 = vsel %vm1355, %v1591, 0.0
    %1598 = vadd.xlane.f32.xlu0 %v1597
    %v1599 = vpop.xlane.xlu0 %1598
    %v1600 = vmul.f32 %v1596, %v1362
    %v1601 = vmul.f32 %v1599, %v1362
    %v1602 = vsub.f32 %v1590, %v1600
    %v1603 = vsub.f32 %v1591, %v1601
    %v1604 = vmul.f32 %v1602, %v1602
    %v1605 = vmul.f32 %v1603, %v1603
    %v1606 = vsel %vm1355, %v1604, 0.0
    %1607 = vadd.xlane.f32.xlu0 %v1606
    %v1608 = vpop.xlane.xlu0 %1607
    %v1609 = vsel %vm1355, %v1605, 0.0
    %1610 = vadd.xlane.f32.xlu0 %v1609
    %v1611 = vpop.xlane.xlu0 %1610
    %v1612 = vmul.f32 %v1608, %v1362
    %v1613 = vmul.f32 %v1611, %v1362
    %v1614 = vadd.f32 %v1612, 1e-05
    %v1615 = vadd.f32 %v1613, 1e-05
    %v1616 = vrsqrt.pop %v1614
    %v1617 = vrsqrt.pop %v1615
    %v1618 = vmul.f32 %v1602, %v1616
    %v1619 = vmul.f32 %v1603, %v1617
    %v1621 = vlaneseq
    %v1622 = vshrl.u32 %v1621, 7
    %v1623 = vsub.s32 0, %v1622
    %v1624 = vrot.slane %v1592, %v1623
    %v1626 = vmul.f32 %v1618, %v1624
    %v1627 = vmul.f32 %v1619, %v1624
    %v1629 = vlaneseq
    %v1630 = vshrl.u32 %v1629, 7
    %v1631 = vsub.s32 0, %v1630
    %v1632 = vrot.slane %v1593, %v1631
    %v1634 = vadd.f32 %v1626, %v1632
    %v1635 = vadd.f32 %v1627, %v1632
    %1636 = vst.msk [vmem:[#allocation3] sm:$0xff] %vm1355, %v1634
    %1637 = vst.msk [vmem:[#allocation3 + $0x8] sm:$0xff] %vm1355, %v1635
    // Predicated region
    $region38: #{tpu_custom_call.1} parent=1 // pred_check
      _
    $region39: #{tpu_custom_call.1} parent=1 // pred_check_branch
      %1639 = sbr.rel (0) target = $region41
    $region40: #{tpu_custom_call.1} parent=1 // pred_region
      %s1641 = ssub.s32 256, 256
      %1642 = vsyncadd [#allocation4], %s1641
      %s1643 = sshll.u32 [#allocation3], 4
      %s1644 = int_to_ptr.vmem [resolvable:$true] %s1643
      %1649 = dma.vmem_to_hbm [thread:$0]  %s1644, 256, %s9, [#allocation4], 128, 128, 8
    $region41: #{tpu_custom_call.1} parent=1 // pred_fallthru
      _
    // Predicated region
    $region42: #{tpu_custom_call.1} parent=1 // pred_check
      _
    $region43: #{tpu_custom_call.1} parent=1 // pred_check_branch
      %1651 = sbr.rel (0) target = $region45
    $region44: #{tpu_custom_call.1} parent=1 // pred_region
      %1652 = dma.done [#allocation4], 256
    $region45: #{tpu_custom_call.1} parent=1 // pred_fallthru
      _
    %1653 = vsyncpa [#allocation4], 1

</llo_original>
